<compile_context>
chip_gen: v5e
topology: v5e:2x2
jax: 0.10.0
libtpu: 0.0.40
codegen_flags: <defaults>
</compile_context>

<pallas_src>
import math
import functools

import jax
import jax.numpy as jnp
from jax.experimental import pallas as pl
from jax.experimental.pallas import tpu as pltpu


def _mha_kernel(q_ref, k_ref, v_ref, qm_ref, kvm_ref,
                wq_ref, bq_ref, wk_ref, bk_ref, wv_ref, bv_ref, wo_ref, bo_ref,
                *out_and_scratch, num_head, scale, return_attn):
    if return_attn:
        x_out_ref, attn_out_ref, kc_ref, vc_ref, ctx_ref = out_and_scratch
    else:
        x_out_ref, kc_ref, vc_ref, ctx_ref = out_and_scratch
        attn_out_ref = None

    qi = pl.program_id(1)
    H = num_head
    D = wq_ref.shape[1]
    Dh = D // H

    keep_q = 1.0 - qm_ref[0]           # (TQ, 1): 1.0 for live query rows
    kv_masked = kvm_ref[0] > 0.0       # (1, Lk) bool, broadcasts over query rows

    # ---- K / V projection: all heads at once, cached across q-tiles ----------
    # (Recomputed only once per batch row; the q-tile axis is innermost/"arbitrary".)
    @pl.when(qi == 0)
    def _():
        kf = jnp.dot(k_ref[0], wk_ref[...],
                     preferred_element_type=jnp.float32) + bk_ref[...]
        vf = jnp.dot(v_ref[0], wv_ref[...],
                     preferred_element_type=jnp.float32) + bv_ref[...]
        kc_ref[...] = kf.astype(kc_ref.dtype)
        vc_ref[...] = vf.astype(vc_ref.dtype)
    # K/V masked_fill intentionally omitted: masked key columns get -inf scores,
    # so their softmax probabilities are exactly zero anyway.

    # ---- Q projection: one full-width (TQ, D) @ (D, D) matmul ----------------
    qf = jnp.dot(q_ref[0], wq_ref[...],
                 preferred_element_type=jnp.float32) + bq_ref[...]
    qf = qf * keep_q                        # masked_fill(q_mask, 0.0) incl. bias
    qs = (qf * scale).astype(jnp.bfloat16)  # 1/sqrt(Dh) folded into Q once

    # ---- per-head attention (static unroll over heads) -----------------------
    for h in range(H):
        lo = h * Dh
        qh = qs[:, lo:lo + Dh]                  # (TQ, Dh) bf16
        kh = kc_ref[:, lo:lo + Dh]              # (Lk, Dh) bf16
        vh = vc_ref[:, lo:lo + Dh]              # (Lk, Dh) bf16
        # contract dim 1 with dim 1 -> MXU consumes K directly, no transpose
        s = jax.lax.dot_general(
            qh, kh, dimension_numbers=(((1,), (1,)), ((), ())),
            preferred_element_type=jnp.float32)                  # (TQ, Lk)
        s = jnp.where(kv_masked, -jnp.inf, s)
        m = jnp.max(s, axis=-1, keepdims=True)
        p = jnp.exp(s - m)
        denom = jnp.sum(p, axis=-1, keepdims=True)
        inv = 1.0 / denom                       # exact: returned rows sum to 1
        attn = p * inv                          # (TQ, Lk) f32
        if attn_out_ref is not None:
            attn_out_ref[0, h] = attn.astype(attn_out_ref.dtype)  # bf16 writeback
        ctx = jnp.dot(attn.astype(jnp.bfloat16), vh,
                      preferred_element_type=jnp.float32)         # (TQ, Dh)
        ctx_ref[:, lo:lo + Dh] = ctx.astype(ctx_ref.dtype)

    # ---- output projection: one wide (TQ, D) @ (D, D) matmul -----------------
    x = jnp.dot(ctx_ref[...], wo_ref[...],
                preferred_element_type=jnp.float32) + bo_ref[...]
    # NOTE: padded tail q-rows (Lq % TQ != 0) may hold garbage; they are masked
    # out of the writeback by Pallas and row-independent, so results are correct.
    x_out_ref[0] = (x * keep_q).astype(x_out_ref.dtype)


def _pick_tiling(q_tile, vmem_limit_bytes):
    """Per-generation defaults: v5e/v6e (128 MiB VMEM) vs v7x (64 MiB) / unknown."""
    cap = None
    try:
        cap = getattr(pltpu.get_tpu_info(), "vmem_capacity_bytes", None)
    except Exception:
        cap = None
    if cap is not None and cap >= 100 * 1024 * 1024:   # v5e / v6e
        tq, lim = 512, 96 * 1024 * 1024
    else:                                              # v7x or unknown: stay safe
        tq, lim = 256, 48 * 1024 * 1024
    return (q_tile if q_tile is not None else tq,
            vmem_limit_bytes if vmem_limit_bytes is not None else lim)


def multi_headed_attention(query, key, value, q_mask, kv_mask, params, num_head,
                           *, q_tile=None, vmem_limit_bytes=None, return_attn=True):
    """Pallas implementation of MultiHeadedAttention.forward
       (layer_cache=None, use_subseq_mask=False path).

    Returns (x_f32, attn_bf16) if return_attn else x_f32.
    """
    B, Lq, D = query.shape
    Lk = key.shape[1]
    H = num_head
    assert D % H == 0
    Dh = D // H

    tq_def, vlim = _pick_tiling(q_tile, vmem_limit_bytes)
    TQ = Lq if Lq <= tq_def else tq_def
    n_q = pl.cdiv(Lq, TQ)

    wq, bq, wk, bk, wv, bv, wo, bo = params
    cd = jnp.bfloat16

    # bf16 MXU operands; biases and masks stay f32 (accumulation is f32).
    q_c = query.astype(cd)
    k_c = key.astype(cd)
    v_c = value.astype(cd)
    wq_c = wq.astype(cd)
    wk_c = wk.astype(cd)
    wv_c = wv.astype(cd)
    wo_c = wo.astype(cd)
    bq_2 = bq.reshape(1, D).astype(jnp.float32)
    bk_2 = bk.reshape(1, D).astype(jnp.float32)
    bv_2 = bv.reshape(1, D).astype(jnp.float32)
    bo_2 = bo.reshape(1, D).astype(jnp.float32)

    qm = q_mask.astype(jnp.float32)[:, :, None]       # (B, Lq, 1)
    kvm = kv_mask.astype(jnp.float32)[:, None, :]     # (B, 1, Lk)

    kernel = functools.partial(_mha_kernel, num_head=H, scale=1.0 / math.sqrt(Dh),
                               return_attn=return_attn)

    in_specs = [
        pl.BlockSpec((1, TQ, D), lambda b, qi: (b, qi, 0)),   # query tile
        pl.BlockSpec((1, Lk, D), lambda b, qi: (b, 0, 0)),    # key   (re-DMA'd only when b changes)
        pl.BlockSpec((1, Lk, D), lambda b, qi: (b, 0, 0)),    # value (re-DMA'd only when b changes)
        pl.BlockSpec((1, TQ, 1), lambda b, qi: (b, qi, 0)),   # q mask (column)
        pl.BlockSpec((1, 1, Lk), lambda b, qi: (b, 0, 0)),    # kv mask (row)
        pl.BlockSpec((D, D), lambda b, qi: (0, 0)),           # Wq  (VMEM-resident)
        pl.BlockSpec((1, D), lambda b, qi: (0, 0)),           # bq
        pl.BlockSpec((D, D), lambda b, qi: (0, 0)),           # Wk
        pl.BlockSpec((1, D), lambda b, qi: (0, 0)),           # bk
        pl.BlockSpec((D, D), lambda b, qi: (0, 0)),           # Wv
        pl.BlockSpec((1, D), lambda b, qi: (0, 0)),           # bv
        pl.BlockSpec((D, D), lambda b, qi: (0, 0)),           # Wo
        pl.BlockSpec((1, D), lambda b, qi: (0, 0)),           # bo
    ]

    x_spec = pl.BlockSpec((1, TQ, D), lambda b, qi: (b, qi, 0))
    if return_attn:
        out_specs = [x_spec,
                     pl.BlockSpec((1, H, TQ, Lk), lambda b, qi: (b, 0, qi, 0))]
        out_shape = (jax.ShapeDtypeStruct((B, Lq, D), jnp.float32),
                     jax.ShapeDtypeStruct((B, H, Lq, Lk), jnp.bfloat16))
    else:
        out_specs = x_spec
        out_shape = jax.ShapeDtypeStruct((B, Lq, D), jnp.float32)

    scratch_shapes = [
        pltpu.VMEM((Lk, D), cd),   # projected K cache (all heads), filled at qi==0
        pltpu.VMEM((Lk, D), cd),   # projected V cache
        pltpu.VMEM((TQ, D), cd),   # per-step context buffer (input to wide Wo matmul)
    ]

    # Advisory cost estimate so XLA can schedule around the kernel.
    flops = (2 * B * D * D * (2 * Lq + 2 * Lk)   # Q/out projections + K/V projections
             + 4 * B * Lq * Lk * D)              # scores + context
    transcendentals = B * H * Lq * Lk            # exp
    bytes_accessed = (2 * (B * Lq * D + 2 * B * Lk * D)     # bf16 activations in
                      + 2 * 4 * D * D + 4 * 4 * D           # bf16 weights + f32 biases
                      + 4 * (B * Lq + B * Lk)               # masks
                      + 4 * B * Lq * D                      # x (f32) out
                      + (2 * B * H * Lq * Lk if return_attn else 0))  # attn (bf16) out

    grid_spec = pltpu.PrefetchScalarGridSpec(
        num_scalar_prefetch=0,
        grid=(B, n_q),
        in_specs=in_specs,
        out_specs=out_specs,
        scratch_shapes=scratch_shapes,
    )

    outs = pl.pallas_call(
        kernel,
        out_shape=out_shape,
        grid_spec=grid_spec,
        compiler_params=pltpu.CompilerParams(
            # Batch is the megacore axis; q-tile axis must stay "arbitrary" so the
            # qi==0 K/V-cache fill is valid on every core (v7x has 2 TCs/chip).
            dimension_semantics=("parallel", "arbitrary"),
            vmem_limit_bytes=vlim,
        ),
        cost_estimate=pl.CostEstimate(flops=flops,
                                      transcendentals=transcendentals,
                                      bytes_accessed=bytes_accessed),
    )(q_c, k_c, v_c, qm, kvm,
      wq_c, bq_2, wk_c, bk_2, wv_c, bv_2, wo_c, bo_2)

    if return_attn:
        x, attn = outs
        return x, attn
    return outs


def _reference(query, key, value, q_mask, kv_mask, params, num_head):
    """Pure-JAX reference mirroring the PyTorch forward exactly (f32)."""
    wq, bq, wk, bk, wv, bv, wo, bo = params
    B, Lq, D = query.shape
    Lk = key.shape[1]
    Dh = D // num_head

    def proj(x, w, b, mask, L):
        y = x @ w + b
        y = y.reshape(B, L, num_head, Dh).transpose(0, 2, 1, 3)   # (B, H, L, Dh)
        m = mask[:, None, :, None]
        return jnp.where(m, 0.0, y)

    Q = proj(query, wq, bq, q_mask, Lq)
    K = proj(key, wk, bk, kv_mask, Lk)
    V = proj(value, wv, bv, kv_mask, Lk)

    scores = jnp.einsum("bhqd,bhkd->bhqk", Q, K) / math.sqrt(Dh)
    scores = jnp.where(kv_mask[:, None, None, :], -jnp.inf, scores)
    attn = jax.nn.softmax(scores, axis=-1)
    x = jnp.einsum("bhqk,bhkd->bhqd", attn, V)
    x = x.transpose(0, 2, 1, 3).reshape(B, Lq, D)
    x = x @ wo + bo
    x = jnp.where(q_mask[:, :, None], 0.0, x)
    return x, attn


if __name__ == "__main__":
    B, Lq, Lk = 2, 8, 8
    num_head, model_dim = 4, 32

    key0 = jax.random.PRNGKey(0)
    keys = jax.random.split(key0, 16)

    query = jax.random.normal(keys[0], (B, Lq, model_dim), jnp.float32)
    key_in = jax.random.normal(keys[1], (B, Lk, model_dim), jnp.float32)
    value = jax.random.normal(keys[2], (B, Lk, model_dim), jnp.float32)

    # boolean masks, True = masked position
    q_mask = jnp.zeros((B, Lq), jnp.bool_).at[0, -1].set(True)
    kv_mask = jnp.zeros((B, Lk), jnp.bool_).at[1, -2:].set(True)

    # Deterministic parameter init (kernel uses y = x @ W + b, i.e. W = torch_weight.T)
    scale = 1.0 / math.sqrt(model_dim)
    params = (
        jax.random.uniform(keys[3], (model_dim, model_dim), jnp.float32, -scale, scale),
        jax.random.uniform(keys[4], (1, model_dim), jnp.float32, -scale, scale),
        jax.random.uniform(keys[5], (model_dim, model_dim), jnp.float32, -scale, scale),
        jax.random.uniform(keys[6], (1, model_dim), jnp.float32, -scale, scale),
        jax.random.uniform(keys[7], (model_dim, model_dim), jnp.float32, -scale, scale),
        jax.random.uniform(keys[8], (1, model_dim), jnp.float32, -scale, scale),
        jax.random.uniform(keys[9], (model_dim, model_dim), jnp.float32, -scale, scale),
        jax.random.uniform(keys[10], (1, model_dim), jnp.float32, -scale, scale),
    )

    x, attn = multi_headed_attention(query, key_in, value, q_mask, kv_mask,
                                     params, num_head)
    jax.block_until_ready((x, attn))

    x_ref, attn_ref = _reference(query, key_in, value, q_mask, kv_mask,
                                 params, num_head)
    # bf16 MXU operands (and bf16 attn writeback) => loose-but-meaningful tolerance.
    assert jnp.allclose(x, x_ref, rtol=5e-2, atol=5e-2), "x mismatch vs reference"
    assert jnp.allclose(attn.astype(jnp.float32), attn_ref,
                        rtol=5e-2, atol=5e-2), "attn mismatch vs reference"

    # x-only path (second output dropped: no (B,H,Lq,Lk) writeback at all).
    x_only = multi_headed_attention(query, key_in, value, q_mask, kv_mask,
                                    params, num_head, return_attn=False)
    jax.block_until_ready(x_only)
    assert jnp.allclose(x_only, x_ref, rtol=5e-2, atol=5e-2), "x-only mismatch"

    print("KERNEL_OK")
</pallas_src>

<mosaic_0001>
module attributes {stable_mosaic.version = 11 : i64} {
  func.func @_mha_kernel(%arg0: i32, %arg1: i32, %arg2: memref<1x8x32xbf16, #tpu.memory_space<vmem>>, %arg3: memref<1x8x32xbf16, #tpu.memory_space<vmem>>, %arg4: memref<1x8x32xbf16, #tpu.memory_space<vmem>>, %arg5: memref<1x8x1xf32, #tpu.memory_space<vmem>>, %arg6: memref<1x1x8xf32, #tpu.memory_space<vmem>>, %arg7: memref<32x32xbf16, #tpu.memory_space<vmem>>, %arg8: memref<1x32xf32, #tpu.memory_space<vmem>>, %arg9: memref<32x32xbf16, #tpu.memory_space<vmem>>, %arg10: memref<1x32xf32, #tpu.memory_space<vmem>>, %arg11: memref<32x32xbf16, #tpu.memory_space<vmem>>, %arg12: memref<1x32xf32, #tpu.memory_space<vmem>>, %arg13: memref<32x32xbf16, #tpu.memory_space<vmem>>, %arg14: memref<1x32xf32, #tpu.memory_space<vmem>>, %arg15: memref<1x8x32xf32, #tpu.memory_space<vmem>>, %arg16: memref<1x4x8x8xbf16, #tpu.memory_space<vmem>>, %arg17: memref<8x32xbf16, #tpu.memory_space<vmem>>, %arg18: memref<8x32xbf16, #tpu.memory_space<vmem>>, %arg19: memref<8x32xbf16, #tpu.memory_space<vmem>>) attributes {dimension_semantics = [#tpu.dimension_semantics<parallel>, #tpu.dimension_semantics<arbitrary>], iteration_bounds = array<i64: 2, 1>, scalar_prefetch = 0 : i64, scratch_operands = 3 : i64, tpu.core_type = #tpu.core_type<tc>, window_params = [{transform_indices = @transform_0, window_bounds = array<i64: 1, 8, 32>}, {transform_indices = @transform_1, window_bounds = array<i64: 1, 8, 32>}, {transform_indices = @transform_2, window_bounds = array<i64: 1, 8, 32>}, {transform_indices = @transform_3, window_bounds = array<i64: 1, 8, 1>}, {transform_indices = @transform_4, window_bounds = array<i64: 1, 1, 8>}, {pipeline_mode = #tpu.pipeline_mode<synchronous>, transform_indices = @transform_5, window_bounds = array<i64: 32, 32>}, {pipeline_mode = #tpu.pipeline_mode<synchronous>, transform_indices = @transform_6, window_bounds = array<i64: 1, 32>}, {pipeline_mode = #tpu.pipeline_mode<synchronous>, transform_indices = @transform_7, window_bounds = array<i64: 32, 32>}, {pipeline_mode = #tpu.pipeline_mode<synchronous>, transform_indices = @transform_8, window_bounds = array<i64: 1, 32>}, {pipeline_mode = #tpu.pipeline_mode<synchronous>, transform_indices = @transform_9, window_bounds = array<i64: 32, 32>}, {pipeline_mode = #tpu.pipeline_mode<synchronous>, transform_indices = @transform_10, window_bounds = array<i64: 1, 32>}, {pipeline_mode = #tpu.pipeline_mode<synchronous>, transform_indices = @transform_11, window_bounds = array<i64: 32, 32>}, {pipeline_mode = #tpu.pipeline_mode<synchronous>, transform_indices = @transform_12, window_bounds = array<i64: 1, 32>}, {transform_indices = @transform_13, window_bounds = array<i64: 1, 8, 32>}, {transform_indices = @transform_14, window_bounds = array<i64: 1, 4, 8, 8>}]} {
    %c0 = arith.constant 0 : index
    %c0_0 = arith.constant 0 : index
    %c0_1 = arith.constant 0 : index
    %0 = vector.load %arg5[%c0, %c0_0, %c0_1] : memref<1x8x1xf32, #tpu.memory_space<vmem>>, vector<1x8x1xf32>
    %1 = vector.shape_cast %0 : vector<1x8x1xf32> to vector<8x1xf32>
    %cst = arith.constant 1.000000e+00 : f32
    %2 = vector.broadcast %cst : f32 to vector<8x1xf32>
    %3 = arith.subf %2, %1 : vector<8x1xf32>
    %c0_2 = arith.constant 0 : index
    %c0_3 = arith.constant 0 : index
    %c0_4 = arith.constant 0 : index
    %4 = vector.load %arg6[%c0_2, %c0_3, %c0_4] : memref<1x1x8xf32, #tpu.memory_space<vmem>>, vector<1x1x8xf32>
    %5 = vector.shape_cast %4 : vector<1x1x8xf32> to vector<1x8xf32>
    %cst_5 = arith.constant 0.000000e+00 : f32
    %6 = vector.broadcast %cst_5 : f32 to vector<1x8xf32>
    %7 = arith.cmpf ogt, %5, %6 : vector<1x8xf32>
    %c0_i32 = arith.constant 0 : i32
    %8 = arith.cmpi eq, %arg1, %c0_i32 : i32
    %9 = arith.extui %8 : i1 to i32
    %c0_i32_6 = arith.constant 0 : i32
    %10 = arith.cmpi ne, %9, %c0_i32_6 : i32
    scf.if %10 {
      %c0_84 = arith.constant 0 : index
      %c0_85 = arith.constant 0 : index
      %c0_86 = arith.constant 0 : index
      %142 = vector.load %arg3[%c0_84, %c0_85, %c0_86] : memref<1x8x32xbf16, #tpu.memory_space<vmem>>, vector<1x8x32xbf16>
      %143 = vector.shape_cast %142 : vector<1x8x32xbf16> to vector<8x32xbf16>
      %c0_87 = arith.constant 0 : index
      %c0_88 = arith.constant 0 : index
      %144 = vector.load %arg9[%c0_87, %c0_88] : memref<32x32xbf16, #tpu.memory_space<vmem>>, vector<32x32xbf16>
      %cst_89 = arith.constant dense<0.000000e+00> : vector<8x32xf32>
      %145 = tpu.matmul %143, %144, %cst_89 {dimension_numbers = #tpu.dot_dimension_numbers<[1], [0], [0], [1], [0, 0, 1, 1], [], []>} : vector<8x32xbf16>, vector<32x32xbf16>, vector<8x32xf32> -> vector<8x32xf32>
      %c0_90 = arith.constant 0 : index
      %c0_91 = arith.constant 0 : index
      %146 = vector.load %arg10[%c0_90, %c0_91] : memref<1x32xf32, #tpu.memory_space<vmem>>, vector<1x32xf32>
      %147 = vector.broadcast %146 : vector<1x32xf32> to vector<8x32xf32>
      %148 = arith.addf %145, %147 : vector<8x32xf32>
      %c0_92 = arith.constant 0 : index
      %c0_93 = arith.constant 0 : index
      %c0_94 = arith.constant 0 : index
      %149 = vector.load %arg4[%c0_92, %c0_93, %c0_94] : memref<1x8x32xbf16, #tpu.memory_space<vmem>>, vector<1x8x32xbf16>
      %150 = vector.shape_cast %149 : vector<1x8x32xbf16> to vector<8x32xbf16>
      %c0_95 = arith.constant 0 : index
      %c0_96 = arith.constant 0 : index
      %151 = vector.load %arg11[%c0_95, %c0_96] : memref<32x32xbf16, #tpu.memory_space<vmem>>, vector<32x32xbf16>
      %cst_97 = arith.constant dense<0.000000e+00> : vector<8x32xf32>
      %152 = tpu.matmul %150, %151, %cst_97 {dimension_numbers = #tpu.dot_dimension_numbers<[1], [0], [0], [1], [0, 0, 1, 1], [], []>} : vector<8x32xbf16>, vector<32x32xbf16>, vector<8x32xf32> -> vector<8x32xf32>
      %c0_98 = arith.constant 0 : index
      %c0_99 = arith.constant 0 : index
      %153 = vector.load %arg12[%c0_98, %c0_99] : memref<1x32xf32, #tpu.memory_space<vmem>>, vector<1x32xf32>
      %154 = vector.broadcast %153 : vector<1x32xf32> to vector<8x32xf32>
      %155 = arith.addf %152, %154 : vector<8x32xf32>
      %156 = arith.truncf %148 : vector<8x32xf32> to vector<8x32xbf16>
      %c0_100 = arith.constant 0 : index
      %c0_101 = arith.constant 0 : index
      %157 = vector.load %arg17[%c0_100, %c0_101] : memref<8x32xbf16, #tpu.memory_space<vmem>>, vector<8x32xbf16>
      tpu.vector_store %arg17[%c0_100, %c0_101], %156 {strides = array<i32>} : memref<8x32xbf16, #tpu.memory_space<vmem>>, vector<8x32xbf16>,
      %158 = arith.truncf %155 : vector<8x32xf32> to vector<8x32xbf16>
      %c0_102 = arith.constant 0 : index
      %c0_103 = arith.constant 0 : index
      %159 = vector.load %arg18[%c0_102, %c0_103] : memref<8x32xbf16, #tpu.memory_space<vmem>>, vector<8x32xbf16>
      tpu.vector_store %arg18[%c0_102, %c0_103], %158 {strides = array<i32>} : memref<8x32xbf16, #tpu.memory_space<vmem>>, vector<8x32xbf16>,
    } else {
    }
    %c0_7 = arith.constant 0 : index
    %c0_8 = arith.constant 0 : index
    %c0_9 = arith.constant 0 : index
    %11 = vector.load %arg2[%c0_7, %c0_8, %c0_9] : memref<1x8x32xbf16, #tpu.memory_space<vmem>>, vector<1x8x32xbf16>
    %12 = vector.shape_cast %11 : vector<1x8x32xbf16> to vector<8x32xbf16>
    %c0_10 = arith.constant 0 : index
    %c0_11 = arith.constant 0 : index
    %13 = vector.load %arg7[%c0_10, %c0_11] : memref<32x32xbf16, #tpu.memory_space<vmem>>, vector<32x32xbf16>
    %cst_12 = arith.constant dense<0.000000e+00> : vector<8x32xf32>
    %14 = tpu.matmul %12, %13, %cst_12 {dimension_numbers = #tpu.dot_dimension_numbers<[1], [0], [0], [1], [0, 0, 1, 1], [], []>} : vector<8x32xbf16>, vector<32x32xbf16>, vector<8x32xf32> -> vector<8x32xf32>
    %c0_13 = arith.constant 0 : index
    %c0_14 = arith.constant 0 : index
    %15 = vector.load %arg8[%c0_13, %c0_14] : memref<1x32xf32, #tpu.memory_space<vmem>>, vector<1x32xf32>
    %16 = vector.broadcast %15 : vector<1x32xf32> to vector<8x32xf32>
    %17 = arith.addf %14, %16 : vector<8x32xf32>
    %18 = vector.broadcast %3 : vector<8x1xf32> to vector<8x32xf32>
    %19 = arith.mulf %17, %18 : vector<8x32xf32>
    %cst_15 = arith.constant 0.353553385 : f32
    %20 = vector.broadcast %cst_15 : f32 to vector<8x32xf32>
    %21 = arith.mulf %19, %20 : vector<8x32xf32>
    %22 = arith.truncf %21 : vector<8x32xf32> to vector<8x32xbf16>
    %23 = vector.extract_strided_slice %22 {offsets = [0, 0], sizes = [8, 8], strides = [1, 1]} : vector<8x32xbf16> to vector<8x8xbf16>
    %c0_16 = arith.constant 0 : index
    %c0_17 = arith.constant 0 : index
    %24 = vector.load %arg17[%c0_16, %c0_17] : memref<8x32xbf16, #tpu.memory_space<vmem>>, vector<8x8xbf16>
    %c0_18 = arith.constant 0 : index
    %c0_19 = arith.constant 0 : index
    %25 = vector.load %arg18[%c0_18, %c0_19] : memref<8x32xbf16, #tpu.memory_space<vmem>>, vector<8x8xbf16>
    %cst_20 = arith.constant dense<0.000000e+00> : vector<8x8xf32>
    %26 = tpu.matmul %23, %24, %cst_20 {dimension_numbers = #tpu.dot_dimension_numbers<[1], [1], [0], [0], [0, 0, 1, 0], [], []>} : vector<8x8xbf16>, vector<8x8xbf16>, vector<8x8xf32> -> vector<8x8xf32>
    %cst_21 = arith.constant 0xFF800000 : f32
    %27 = vector.shape_cast %7 : vector<1x8xi1> to vector<1x8xi1>
    %28 = vector.broadcast %27 : vector<1x8xi1> to vector<8x8xi1>
    %29 = vector.broadcast %cst_21 : f32 to vector<8x8xf32>
    %30 = arith.select %28, %29, %26 : vector<8x8xi1>, vector<8x8xf32>
    %cst_22 = arith.constant dense<0xFF800000> : vector<8xf32>
    %31 = vector.multi_reduction <maximumf>, %30, %cst_22 [1] : vector<8x8xf32> to vector<8xf32>
    %32 = vector.shape_cast %31 : vector<8xf32> to vector<8x1xf32>
    %33 = vector.broadcast %32 : vector<8x1xf32> to vector<8x8xf32>
    %34 = arith.subf %30, %33 : vector<8x8xf32>
    %35 = math.exp %34 : vector<8x8xf32>
    %cst_23 = arith.constant dense<0.000000e+00> : vector<8xf32>
    %36 = vector.multi_reduction <add>, %35, %cst_23 [1] : vector<8x8xf32> to vector<8xf32>
    %37 = vector.shape_cast %36 : vector<8xf32> to vector<8x1xf32>
    %cst_24 = arith.constant 1.000000e+00 : f32
    %38 = vector.broadcast %cst_24 : f32 to vector<8x1xf32>
    %39 = arith.divf %38, %37 : vector<8x1xf32>
    %40 = vector.broadcast %39 : vector<8x1xf32> to vector<8x8xf32>
    %41 = arith.mulf %35, %40 : vector<8x8xf32>
    %42 = arith.truncf %41 : vector<8x8xf32> to vector<8x8xbf16>
    %c0_25 = arith.constant 0 : index
    %c0_26 = arith.constant 0 : index
    %c0_27 = arith.constant 0 : index
    %c0_28 = arith.constant 0 : index
    %43 = vector.load %arg16[%c0_25, %c0_26, %c0_27, %c0_28] : memref<1x4x8x8xbf16, #tpu.memory_space<vmem>>, vector<1x1x8x8xbf16>
    %44 = vector.shape_cast %43 : vector<1x1x8x8xbf16> to vector<8x8xbf16>
    %45 = vector.shape_cast %42 : vector<8x8xbf16> to vector<1x1x8x8xbf16>
    tpu.vector_store %arg16[%c0_25, %c0_26, %c0_27, %c0_28], %45 {strides = array<i32>} : memref<1x4x8x8xbf16, #tpu.memory_space<vmem>>, vector<1x1x8x8xbf16>,
    %46 = arith.truncf %41 : vector<8x8xf32> to vector<8x8xbf16>
    %cst_29 = arith.constant dense<0.000000e+00> : vector<8x8xf32>
    %47 = tpu.matmul %46, %25, %cst_29 {dimension_numbers = #tpu.dot_dimension_numbers<[1], [0], [0], [1], [0, 0, 1, 1], [], []>} : vector<8x8xbf16>, vector<8x8xbf16>, vector<8x8xf32> -> vector<8x8xf32>
    %48 = arith.truncf %47 : vector<8x8xf32> to vector<8x8xbf16>
    %c0_30 = arith.constant 0 : index
    %c0_31 = arith.constant 0 : index
    %49 = vector.load %arg19[%c0_30, %c0_31] : memref<8x32xbf16, #tpu.memory_space<vmem>>, vector<8x8xbf16>
    tpu.vector_store %arg19[%c0_30, %c0_31], %48 {strides = array<i32>} : memref<8x32xbf16, #tpu.memory_space<vmem>>, vector<8x8xbf16>,
    %50 = vector.extract_strided_slice %22 {offsets = [0, 8], sizes = [8, 8], strides = [1, 1]} : vector<8x32xbf16> to vector<8x8xbf16>
    %c0_32 = arith.constant 0 : index
    %c8 = arith.constant 8 : index
    %51 = vector.load %arg17[%c0_32, %c8] : memref<8x32xbf16, #tpu.memory_space<vmem>>, vector<8x8xbf16>
    %c0_33 = arith.constant 0 : index
    %c8_34 = arith.constant 8 : index
    %52 = vector.load %arg18[%c0_33, %c8_34] : memref<8x32xbf16, #tpu.memory_space<vmem>>, vector<8x8xbf16>
    %cst_35 = arith.constant dense<0.000000e+00> : vector<8x8xf32>
    %53 = tpu.matmul %50, %51, %cst_35 {dimension_numbers = #tpu.dot_dimension_numbers<[1], [1], [0], [0], [0, 0, 1, 0], [], []>} : vector<8x8xbf16>, vector<8x8xbf16>, vector<8x8xf32> -> vector<8x8xf32>
    %cst_36 = arith.constant 0xFF800000 : f32
    %54 = vector.shape_cast %7 : vector<1x8xi1> to vector<1x8xi1>
    %55 = vector.broadcast %54 : vector<1x8xi1> to vector<8x8xi1>
    %56 = vector.broadcast %cst_36 : f32 to vector<8x8xf32>
    %57 = arith.select %55, %56, %53 : vector<8x8xi1>, vector<8x8xf32>
    %cst_37 = arith.constant dense<0xFF800000> : vector<8xf32>
    %58 = vector.multi_reduction <maximumf>, %57, %cst_37 [1] : vector<8x8xf32> to vector<8xf32>
    %59 = vector.shape_cast %58 : vector<8xf32> to vector<8x1xf32>
    %60 = vector.broadcast %59 : vector<8x1xf32> to vector<8x8xf32>
    %61 = arith.subf %57, %60 : vector<8x8xf32>
    %62 = math.exp %61 : vector<8x8xf32>
    %cst_38 = arith.constant dense<0.000000e+00> : vector<8xf32>
    %63 = vector.multi_reduction <add>, %62, %cst_38 [1] : vector<8x8xf32> to vector<8xf32>
    %64 = vector.shape_cast %63 : vector<8xf32> to vector<8x1xf32>
    %cst_39 = arith.constant 1.000000e+00 : f32
    %65 = vector.broadcast %cst_39 : f32 to vector<8x1xf32>
    %66 = arith.divf %65, %64 : vector<8x1xf32>
    %67 = vector.broadcast %66 : vector<8x1xf32> to vector<8x8xf32>
    %68 = arith.mulf %62, %67 : vector<8x8xf32>
    %69 = arith.truncf %68 : vector<8x8xf32> to vector<8x8xbf16>
    %c0_40 = arith.constant 0 : index
    %c1 = arith.constant 1 : index
    %c0_41 = arith.constant 0 : index
    %c0_42 = arith.constant 0 : index
    %70 = vector.load %arg16[%c0_40, %c1, %c0_41, %c0_42] : memref<1x4x8x8xbf16, #tpu.memory_space<vmem>>, vector<1x1x8x8xbf16>
    %71 = vector.shape_cast %70 : vector<1x1x8x8xbf16> to vector<8x8xbf16>
    %72 = vector.shape_cast %69 : vector<8x8xbf16> to vector<1x1x8x8xbf16>
    tpu.vector_store %arg16[%c0_40, %c1, %c0_41, %c0_42], %72 {strides = array<i32>} : memref<1x4x8x8xbf16, #tpu.memory_space<vmem>>, vector<1x1x8x8xbf16>,
    %73 = arith.truncf %68 : vector<8x8xf32> to vector<8x8xbf16>
    %cst_43 = arith.constant dense<0.000000e+00> : vector<8x8xf32>
    %74 = tpu.matmul %73, %52, %cst_43 {dimension_numbers = #tpu.dot_dimension_numbers<[1], [0], [0], [1], [0, 0, 1, 1], [], []>} : vector<8x8xbf16>, vector<8x8xbf16>, vector<8x8xf32> -> vector<8x8xf32>
    %75 = arith.truncf %74 : vector<8x8xf32> to vector<8x8xbf16>
    %c0_44 = arith.constant 0 : index
    %c8_45 = arith.constant 8 : index
    %76 = vector.load %arg19[%c0_44, %c8_45] : memref<8x32xbf16, #tpu.memory_space<vmem>>, vector<8x8xbf16>
    tpu.vector_store %arg19[%c0_44, %c8_45], %75 {strides = array<i32>} : memref<8x32xbf16, #tpu.memory_space<vmem>>, vector<8x8xbf16>,
    %77 = vector.extract_strided_slice %22 {offsets = [0, 16], sizes = [8, 8], strides = [1, 1]} : vector<8x32xbf16> to vector<8x8xbf16>
    %c0_46 = arith.constant 0 : index
    %c16 = arith.constant 16 : index
    %78 = vector.load %arg17[%c0_46, %c16] : memref<8x32xbf16, #tpu.memory_space<vmem>>, vector<8x8xbf16>
    %c0_47 = arith.constant 0 : index
    %c16_48 = arith.constant 16 : index
    %79 = vector.load %arg18[%c0_47, %c16_48] : memref<8x32xbf16, #tpu.memory_space<vmem>>, vector<8x8xbf16>
    %cst_49 = arith.constant dense<0.000000e+00> : vector<8x8xf32>
    %80 = tpu.matmul %77, %78, %cst_49 {dimension_numbers = #tpu.dot_dimension_numbers<[1], [1], [0], [0], [0, 0, 1, 0], [], []>} : vector<8x8xbf16>, vector<8x8xbf16>, vector<8x8xf32> -> vector<8x8xf32>
    %cst_50 = arith.constant 0xFF800000 : f32
    %81 = vector.shape_cast %7 : vector<1x8xi1> to vector<1x8xi1>
    %82 = vector.broadcast %81 : vector<1x8xi1> to vector<8x8xi1>
    %83 = vector.broadcast %cst_50 : f32 to vector<8x8xf32>
    %84 = arith.select %82, %83, %80 : vector<8x8xi1>, vector<8x8xf32>
    %cst_51 = arith.constant dense<0xFF800000> : vector<8xf32>
    %85 = vector.multi_reduction <maximumf>, %84, %cst_51 [1] : vector<8x8xf32> to vector<8xf32>
    %86 = vector.shape_cast %85 : vector<8xf32> to vector<8x1xf32>
    %87 = vector.broadcast %86 : vector<8x1xf32> to vector<8x8xf32>
    %88 = arith.subf %84, %87 : vector<8x8xf32>
    %89 = math.exp %88 : vector<8x8xf32>
    %cst_52 = arith.constant dense<0.000000e+00> : vector<8xf32>
    %90 = vector.multi_reduction <add>, %89, %cst_52 [1] : vector<8x8xf32> to vector<8xf32>
    %91 = vector.shape_cast %90 : vector<8xf32> to vector<8x1xf32>
    %cst_53 = arith.constant 1.000000e+00 : f32
    %92 = vector.broadcast %cst_53 : f32 to vector<8x1xf32>
    %93 = arith.divf %92, %91 : vector<8x1xf32>
    %94 = vector.broadcast %93 : vector<8x1xf32> to vector<8x8xf32>
    %95 = arith.mulf %89, %94 : vector<8x8xf32>
    %96 = arith.truncf %95 : vector<8x8xf32> to vector<8x8xbf16>
    %c0_54 = arith.constant 0 : index
    %c2 = arith.constant 2 : index
    %c0_55 = arith.constant 0 : index
    %c0_56 = arith.constant 0 : index
    %97 = vector.load %arg16[%c0_54, %c2, %c0_55, %c0_56] : memref<1x4x8x8xbf16, #tpu.memory_space<vmem>>, vector<1x1x8x8xbf16>
    %98 = vector.shape_cast %97 : vector<1x1x8x8xbf16> to vector<8x8xbf16>
    %99 = vector.shape_cast %96 : vector<8x8xbf16> to vector<1x1x8x8xbf16>
    tpu.vector_store %arg16[%c0_54, %c2, %c0_55, %c0_56], %99 {strides = array<i32>} : memref<1x4x8x8xbf16, #tpu.memory_space<vmem>>, vector<1x1x8x8xbf16>,
    %100 = arith.truncf %95 : vector<8x8xf32> to vector<8x8xbf16>
    %cst_57 = arith.constant dense<0.000000e+00> : vector<8x8xf32>
    %101 = tpu.matmul %100, %79, %cst_57 {dimension_numbers = #tpu.dot_dimension_numbers<[1], [0], [0], [1], [0, 0, 1, 1], [], []>} : vector<8x8xbf16>, vector<8x8xbf16>, vector<8x8xf32> -> vector<8x8xf32>
    %102 = arith.truncf %101 : vector<8x8xf32> to vector<8x8xbf16>
    %c0_58 = arith.constant 0 : index
    %c16_59 = arith.constant 16 : index
    %103 = vector.load %arg19[%c0_58, %c16_59] : memref<8x32xbf16, #tpu.memory_space<vmem>>, vector<8x8xbf16>
    tpu.vector_store %arg19[%c0_58, %c16_59], %102 {strides = array<i32>} : memref<8x32xbf16, #tpu.memory_space<vmem>>, vector<8x8xbf16>,
    %104 = vector.extract_strided_slice %22 {offsets = [0, 24], sizes = [8, 8], strides = [1, 1]} : vector<8x32xbf16> to vector<8x8xbf16>
    %c0_60 = arith.constant 0 : index
    %c24 = arith.constant 24 : index
    %105 = vector.load %arg17[%c0_60, %c24] : memref<8x32xbf16, #tpu.memory_space<vmem>>, vector<8x8xbf16>
    %c0_61 = arith.constant 0 : index
    %c24_62 = arith.constant 24 : index
    %106 = vector.load %arg18[%c0_61, %c24_62] : memref<8x32xbf16, #tpu.memory_space<vmem>>, vector<8x8xbf16>
    %cst_63 = arith.constant dense<0.000000e+00> : vector<8x8xf32>
    %107 = tpu.matmul %104, %105, %cst_63 {dimension_numbers = #tpu.dot_dimension_numbers<[1], [1], [0], [0], [0, 0, 1, 0], [], []>} : vector<8x8xbf16>, vector<8x8xbf16>, vector<8x8xf32> -> vector<8x8xf32>
    %cst_64 = arith.constant 0xFF800000 : f32
    %108 = vector.shape_cast %7 : vector<1x8xi1> to vector<1x8xi1>
    %109 = vector.broadcast %108 : vector<1x8xi1> to vector<8x8xi1>
    %110 = vector.broadcast %cst_64 : f32 to vector<8x8xf32>
    %111 = arith.select %109, %110, %107 : vector<8x8xi1>, vector<8x8xf32>
    %cst_65 = arith.constant dense<0xFF800000> : vector<8xf32>
    %112 = vector.multi_reduction <maximumf>, %111, %cst_65 [1] : vector<8x8xf32> to vector<8xf32>
    %113 = vector.shape_cast %112 : vector<8xf32> to vector<8x1xf32>
    %114 = vector.broadcast %113 : vector<8x1xf32> to vector<8x8xf32>
    %115 = arith.subf %111, %114 : vector<8x8xf32>
    %116 = math.exp %115 : vector<8x8xf32>
    %cst_66 = arith.constant dense<0.000000e+00> : vector<8xf32>
    %117 = vector.multi_reduction <add>, %116, %cst_66 [1] : vector<8x8xf32> to vector<8xf32>
    %118 = vector.shape_cast %117 : vector<8xf32> to vector<8x1xf32>
    %cst_67 = arith.constant 1.000000e+00 : f32
    %119 = vector.broadcast %cst_67 : f32 to vector<8x1xf32>
    %120 = arith.divf %119, %118 : vector<8x1xf32>
    %121 = vector.broadcast %120 : vector<8x1xf32> to vector<8x8xf32>
    %122 = arith.mulf %116, %121 : vector<8x8xf32>
    %123 = arith.truncf %122 : vector<8x8xf32> to vector<8x8xbf16>
    %c0_68 = arith.constant 0 : index
    %c3 = arith.constant 3 : index
    %c0_69 = arith.constant 0 : index
    %c0_70 = arith.constant 0 : index
    %124 = vector.load %arg16[%c0_68, %c3, %c0_69, %c0_70] : memref<1x4x8x8xbf16, #tpu.memory_space<vmem>>, vector<1x1x8x8xbf16>
    %125 = vector.shape_cast %124 : vector<1x1x8x8xbf16> to vector<8x8xbf16>
    %126 = vector.shape_cast %123 : vector<8x8xbf16> to vector<1x1x8x8xbf16>
    tpu.vector_store %arg16[%c0_68, %c3, %c0_69, %c0_70], %126 {strides = array<i32>} : memref<1x4x8x8xbf16, #tpu.memory_space<vmem>>, vector<1x1x8x8xbf16>,
    %127 = arith.truncf %122 : vector<8x8xf32> to vector<8x8xbf16>
    %cst_71 = arith.constant dense<0.000000e+00> : vector<8x8xf32>
    %128 = tpu.matmul %127, %106, %cst_71 {dimension_numbers = #tpu.dot_dimension_numbers<[1], [0], [0], [1], [0, 0, 1, 1], [], []>} : vector<8x8xbf16>, vector<8x8xbf16>, vector<8x8xf32> -> vector<8x8xf32>
    %129 = arith.truncf %128 : vector<8x8xf32> to vector<8x8xbf16>
    %c0_72 = arith.constant 0 : index
    %c24_73 = arith.constant 24 : index
    %130 = vector.load %arg19[%c0_72, %c24_73] : memref<8x32xbf16, #tpu.memory_space<vmem>>, vector<8x8xbf16>
    tpu.vector_store %arg19[%c0_72, %c24_73], %129 {strides = array<i32>} : memref<8x32xbf16, #tpu.memory_space<vmem>>, vector<8x8xbf16>,
    %c0_74 = arith.constant 0 : index
    %c0_75 = arith.constant 0 : index
    %131 = vector.load %arg19[%c0_74, %c0_75] : memref<8x32xbf16, #tpu.memory_space<vmem>>, vector<8x32xbf16>
    %c0_76 = arith.constant 0 : index
    %c0_77 = arith.constant 0 : index
    %132 = vector.load %arg13[%c0_76, %c0_77] : memref<32x32xbf16, #tpu.memory_space<vmem>>, vector<32x32xbf16>
    %cst_78 = arith.constant dense<0.000000e+00> : vector<8x32xf32>
    %133 = tpu.matmul %131, %132, %cst_78 {dimension_numbers = #tpu.dot_dimension_numbers<[1], [0], [0], [1], [0, 0, 1, 1], [], []>} : vector<8x32xbf16>, vector<32x32xbf16>, vector<8x32xf32> -> vector<8x32xf32>
    %c0_79 = arith.constant 0 : index
    %c0_80 = arith.constant 0 : index
    %134 = vector.load %arg14[%c0_79, %c0_80] : memref<1x32xf32, #tpu.memory_space<vmem>>, vector<1x32xf32>
    %135 = vector.broadcast %134 : vector<1x32xf32> to vector<8x32xf32>
    %136 = arith.addf %133, %135 : vector<8x32xf32>
    %137 = vector.broadcast %3 : vector<8x1xf32> to vector<8x32xf32>
    %138 = arith.mulf %136, %137 : vector<8x32xf32>
    %c0_81 = arith.constant 0 : index
    %c0_82 = arith.constant 0 : index
    %c0_83 = arith.constant 0 : index
    %139 = vector.load %arg15[%c0_81, %c0_82, %c0_83] : memref<1x8x32xf32, #tpu.memory_space<vmem>>, vector<1x8x32xf32>
    %140 = vector.shape_cast %139 : vector<1x8x32xf32> to vector<8x32xf32>
    %141 = vector.shape_cast %138 : vector<8x32xf32> to vector<1x8x32xf32>
    tpu.vector_store %arg15[%c0_81, %c0_82, %c0_83], %141 {strides = array<i32>} : memref<1x8x32xf32, #tpu.memory_space<vmem>>, vector<1x8x32xf32>,
    return
  }
  func.func @transform_0(%arg0: i32, %arg1: i32) -> (i32, i32, i32) {
    %c0_i32 = arith.constant 0 : i32
    %c0_i32_0 = arith.constant 0 : i32
    return %arg0, %arg1, %c0_i32 : i32, i32, i32
  }
  func.func @transform_1(%arg0: i32, %arg1: i32) -> (i32, i32, i32) {
    %c0_i32 = arith.constant 0 : i32
    %c0_i32_0 = arith.constant 0 : i32
    %c0_i32_1 = arith.constant 0 : i32
    return %arg0, %c0_i32, %c0_i32_0 : i32, i32, i32
  }
  func.func @transform_2(%arg0: i32, %arg1: i32) -> (i32, i32, i32) {
    %c0_i32 = arith.constant 0 : i32
    %c0_i32_0 = arith.constant 0 : i32
    %c0_i32_1 = arith.constant 0 : i32
    return %arg0, %c0_i32, %c0_i32_0 : i32, i32, i32
  }
  func.func @transform_3(%arg0: i32, %arg1: i32) -> (i32, i32, i32) {
    %c0_i32 = arith.constant 0 : i32
    %c0_i32_0 = arith.constant 0 : i32
    return %arg0, %arg1, %c0_i32 : i32, i32, i32
  }
  func.func @transform_4(%arg0: i32, %arg1: i32) -> (i32, i32, i32) {
    %c0_i32 = arith.constant 0 : i32
    %c0_i32_0 = arith.constant 0 : i32
    %c0_i32_1 = arith.constant 0 : i32
    return %arg0, %c0_i32, %c0_i32_0 : i32, i32, i32
  }
  func.func @transform_5(%arg0: i32, %arg1: i32) -> (i32, i32) {
    %c0_i32 = arith.constant 0 : i32
    %c0_i32_0 = arith.constant 0 : i32
    %c0_i32_1 = arith.constant 0 : i32
    return %c0_i32, %c0_i32_0 : i32, i32
  }
  func.func @transform_6(%arg0: i32, %arg1: i32) -> (i32, i32) {
    %c0_i32 = arith.constant 0 : i32
    %c0_i32_0 = arith.constant 0 : i32
    %c0_i32_1 = arith.constant 0 : i32
    return %c0_i32, %c0_i32_0 : i32, i32
  }
  func.func @transform_7(%arg0: i32, %arg1: i32) -> (i32, i32) {
    %c0_i32 = arith.constant 0 : i32
    %c0_i32_0 = arith.constant 0 : i32
    %c0_i32_1 = arith.constant 0 : i32
    return %c0_i32, %c0_i32_0 : i32, i32
  }
  func.func @transform_8(%arg0: i32, %arg1: i32) -> (i32, i32) {
    %c0_i32 = arith.constant 0 : i32
    %c0_i32_0 = arith.constant 0 : i32
    %c0_i32_1 = arith.constant 0 : i32
    return %c0_i32, %c0_i32_0 : i32, i32
  }
  func.func @transform_9(%arg0: i32, %arg1: i32) -> (i32, i32) {
    %c0_i32 = arith.constant 0 : i32
    %c0_i32_0 = arith.constant 0 : i32
    %c0_i32_1 = arith.constant 0 : i32
    return %c0_i32, %c0_i32_0 : i32, i32
  }
  func.func @transform_10(%arg0: i32, %arg1: i32) -> (i32, i32) {
    %c0_i32 = arith.constant 0 : i32
    %c0_i32_0 = arith.constant 0 : i32
    %c0_i32_1 = arith.constant 0 : i32
    return %c0_i32, %c0_i32_0 : i32, i32
  }
  func.func @transform_11(%arg0: i32, %arg1: i32) -> (i32, i32) {
    %c0_i32 = arith.constant 0 : i32
    %c0_i32_0 = arith.constant 0 : i32
    %c0_i32_1 = arith.constant 0 : i32
    return %c0_i32, %c0_i32_0 : i32, i32
  }
  func.func @transform_12(%arg0: i32, %arg1: i32) -> (i32, i32) {
    %c0_i32 = arith.constant 0 : i32
    %c0_i32_0 = arith.constant 0 : i32
    %c0_i32_1 = arith.constant 0 : i32
    return %c0_i32, %c0_i32_0 : i32, i32
  }
  func.func @transform_13(%arg0: i32, %arg1: i32) -> (i32, i32, i32) {
    %c0_i32 = arith.constant 0 : i32
    %c0_i32_0 = arith.constant 0 : i32
    return %arg0, %arg1, %c0_i32 : i32, i32, i32
  }
  func.func @transform_14(%arg0: i32, %arg1: i32) -> (i32, i32, i32, i32) {
    %c0_i32 = arith.constant 0 : i32
    %c0_i32_0 = arith.constant 0 : i32
    %c0_i32_1 = arith.constant 0 : i32
    return %arg0, %c0_i32, %arg1, %c0_i32_0 : i32, i32, i32, i32
  }
}

</mosaic_0001>

<llo_original>
// kernel: tpu_custom_call.1
$region0: #{tpu_custom_call.1}
  #allocation0 [shape = 'u32[]', space=smem, size = 0x4, offset = 0x4, fixed_abs, tag = 'smem constant byte address 0x4 - core index']
  #allocation1 [shape = 'u32[72,128]{1,0:T(1,128)}', space=vmem, size = 0x9000, scoped, tag = 'internal scratch']
  #allocation2 [shape = 'bf16[8,32]{1,0:T(8,128)(2,1)}', space=vmem, size = 0x800, scoped, tag = 'scratch operand']
  #allocation3 [shape = 'bf16[8,32]{1,0:T(8,128)(2,1)}', space=vmem, size = 0x800, scoped, tag = 'scratch operand']
  #allocation4 [shape = 'bf16[8,32]{1,0:T(8,128)(2,1)}', space=vmem, size = 0x800, scoped, tag = 'scratch operand']
  %s0 = inlined_call_operand.hbm [shape: bf16[2,8,32], index: 0, kind: input, shape index: {}]
  %s1 = inlined_call_operand.hbm [shape: bf16[2,8,32], index: 1, kind: input, shape index: {}]
  %s2 = inlined_call_operand.hbm [shape: bf16[2,8,32], index: 2, kind: input, shape index: {}]
  %s3 = inlined_call_operand.vmem [shape: f32[2,8,1], index: 3, kind: input, shape index: {}]
  %s4 = inlined_call_operand.vmem [shape: f32[2,1,8], index: 4, kind: input, shape index: {}]
  %s5 = inlined_call_operand.vmem [shape: bf16[32,32], index: 5, kind: input, shape index: {}]
  %s6 = inlined_call_operand.vmem [shape: f32[1,32], index: 6, kind: input, shape index: {}]
  %s7 = inlined_call_operand.hbm [shape: bf16[32,32], index: 7, kind: input, shape index: {}]
  %s8 = inlined_call_operand.vmem [shape: f32[1,32], index: 8, kind: input, shape index: {}]
  %s9 = inlined_call_operand.hbm [shape: bf16[32,32], index: 9, kind: input, shape index: {}]
  %s10 = inlined_call_operand.vmem [shape: f32[1,32], index: 10, kind: input, shape index: {}]
  %s11 = inlined_call_operand.hbm [shape: bf16[32,32], index: 11, kind: input, shape index: {}]
  %s12 = inlined_call_operand.vmem [shape: f32[1,32], index: 12, kind: input, shape index: {}]
  %s13 = inlined_call_operand.hbm [shape: f32[2,8,32], index: 13, kind: output, shape index: {0}]
  %s14 = inlined_call_operand.hbm [shape: bf16[2,4,8,8], index: 14, kind: output, shape index: {1}]
  %15 = xla_tuple %s13, %s14
  %s16 = sld [smem:[#allocation0]]
  $region121: #{tpu_custom_call.1} parent=0
    _
  %s18 = ssub.s32 1, %s16
  %s19 = scalar_select 0, %s18, %s16
  $region1: #{tpu_custom_call.1} parent=0
    #allocation5 [shape = 'u8[4096]{0}', space=vmem, size = 0x1000, scoped, tag = 'input window, operand 0']
    #allocation6 [shape = 's32[2]{0}', space=sflag, size = 0x8, scoped, tag = 'scoped memory for tpu_custom_call.1']
    #allocation7 [shape = 's32[2]{0}', space=sflag, size = 0x8, scoped, tag = 'scoped memory for tpu_custom_call.1']
    #allocation8 [shape = 'u8[4096]{0}', space=vmem, size = 0x1000, scoped, tag = 'input window, operand 1']
    #allocation9 [shape = 's32[2]{0}', space=sflag, size = 0x8, scoped, tag = 'scoped memory for tpu_custom_call.1']
    #allocation10 [shape = 'u8[4096]{0}', space=vmem, size = 0x1000, scoped, tag = 'input window, operand 2']
    #allocation11 [shape = 'u8[8192]{0}', space=vmem, size = 0x2000, scoped, tag = 'input window, operand 7, single buffered']
    #allocation12 [shape = 's32[1]{0}', space=sflag, size = 0x4, scoped, tag = 'scoped memory for tpu_custom_call.1']
    #allocation13 [shape = 'u8[8192]{0}', space=vmem, size = 0x2000, scoped, tag = 'input window, operand 9, single buffered']
    #allocation14 [shape = 'u8[8192]{0}', space=vmem, size = 0x2000, scoped, tag = 'input window, operand 11, single buffered']
    #allocation15 [shape = 's32[1]{0}', space=sflag, size = 0x4, scoped, tag = 'scoped memory for tpu_custom_call.1']
    #allocation16 [shape = 'u8[8192]{0}', space=vmem, size = 0x2000, scoped, tag = 'output window, operand 0']
    #allocation17 [shape = 'u8[16384]{0}', space=vmem, size = 0x4000, scoped, tag = 'output window, operand 1']
    #allocation18 [shape = 's32[2]{0}', space=sflag, size = 0x8, scoped, tag = 'scoped memory for tpu_custom_call.1']
    %20 = vsyncpa [#allocation6], 0
    %s21 = scalar_lea.sflag [#allocation6], 1
    %22 = vsyncpa %s21, 0
    %23 = vsyncpa [#allocation9], 0
    %s24 = scalar_lea.sflag [#allocation9], 1
    %25 = vsyncpa %s24, 0
    %26 = vsyncpa [#allocation12], 0
    %27 = vsyncpa [#allocation15], 0
    %28 = vsyncpa [#allocation7], 0
    %s29 = scalar_lea.sflag [#allocation7], 1
    %30 = vsyncpa %s29, 0
    %31 = vsyncpa [#allocation18], 0
    %s32 = scalar_lea.sflag [#allocation18], 1
    %33 = vsyncpa %s32, 0
    loop: start=0, step=1, limit=4
    $region2: #{tpu_custom_call.1} parent=1 // loop_pre_header
      _
    $region3: #{tpu_custom_call.1} parent=1 // loop_header
      %s35 = sphi 0, %s39
      %p36 = scmp.ge.s32.totalorder %s35, 4
      %s42 = sphi 0, %s54
      %s43 = sphi 0, %s50
      %s44 = sphi 0, %s42
      %s45 = sphi 0, %s43
      %s46 = sphi 0, %s44
      %s47 = sphi 0, %s45
      %s59 = sphi 0, %s61
      %s62 = sphi 0, %s59
      %s63 = sphi 0, %s62
      %s79 = sphi 0, %s63
      %s85 = sphi 0, %s87
      %s88 = sphi 0, %s85
      %s89 = sphi 0, %s88
      %s105 = sphi 0, %s89
      %s111 = sphi 0, %s113
      %s114 = sphi 0, %s111
      %s115 = sphi 0, %s114
      %s131 = sphi 0, %s115
      %s139 = sphi 0, %s141
      %s142 = sphi 0, %s139
      %s143 = sphi 0, %s142
      %s159 = sphi 0, %s143
      %s165 = sphi 0, %s167
      %s168 = sphi 0, %s165
      %s169 = sphi 0, %s168
      %s185 = sphi 0, %s169
      %s189 = sphi 0, %s189
      %s191 = sphi 0, %s189
      %s192 = sphi 0, %s191
      %s206 = sphi 0, %s192
      %s210 = sphi 0, %s210
      %s212 = sphi 0, %s210
      %s213 = sphi 0, %s212
      %s227 = sphi 0, %s213
      %s231 = sphi 0, %s231
      %s233 = sphi 0, %s231
      %s234 = sphi 0, %s233
      %s248 = sphi 0, %s234
      %s252 = sphi 0, %s252
      %s254 = sphi 0, %s252
      %s255 = sphi 0, %s254
      %s269 = sphi 0, %s255
      %s273 = sphi 0, %s273
      %s275 = sphi 0, %s273
      %s276 = sphi 0, %s275
      %s290 = sphi 0, %s276
      %s294 = sphi 0, %s294
      %s296 = sphi 0, %s294
      %s297 = sphi 0, %s296
      %s311 = sphi 0, %s297
      %s315 = sphi 0, %s315
      %s317 = sphi 0, %s315
      %s318 = sphi 0, %s317
      %s332 = sphi 0, %s318
      %s336 = sphi 0, %s336
      %s338 = sphi 0, %s336
      %s339 = sphi 0, %s338
      %s353 = sphi 0, %s339
      %s361 = sphi 0, %s363
      %s364 = sphi 0, %s361
      %s365 = sphi 0, %s364
      %s381 = sphi 0, %s365
      %s389 = sphi 0, %s391
      %s392 = sphi 0, %s389
      %s393 = sphi 0, %s392
      %s409 = sphi 0, %s393
    $region4: #{tpu_custom_call.1} parent=1 // loop_header_branch
      %38 = sbr.rel (%p36) target = $region8
    $region5: #{tpu_custom_call.1} parent=1 // loop_body
      %s40 = ssub.s32 %s35, 1
      %s41 = ssub.s32 %s35, 2
      %s48 = sadd.s32 1, %s43
      %p49 = scmp.ge.s32.totalorder %s48, 1
      %s50 = scalar_select %p49, 0, %s48
      %s51 = sadd.s32 1, %s42
      %s52 = scalar_select %p49, %s51, %s42
      %p53 = scmp.ge.s32.totalorder %s52, 2
      %s54 = scalar_select %p53, 0, %s52
      %s55 = ssub.s32 %s42, %s54
      %s56 = ssub.s32 %s43, %s50
      %s57 = sor.u32 %s55, %s56
      %p58 = scmp.eq.s32.totalorder %s57, 0
      %s60 = sadd.s32 %s59, 1
      %s61 = scalar_select %p58, %s59, %s60
      %p64 = pneg %p58
      %p65 = scmp.eq.s32.totalorder %s35, 1
      %p66 = por %p64, %p65
      %p67 = scmp.ne.s32.totalorder %s59, %s62
      %p68 = scmp.eq.s32.totalorder %s35, 0
      %p69 = por %p67, %p68
      %p70 = scmp.ne.s32.totalorder %s59, %s62
      %p71 = scmp.eq.s32.totalorder %s40, 1
      %p72 = por %p70, %p71
      %p73 = scmp.ne.s32.totalorder %s62, %s63
      %p74 = scmp.eq.s32.totalorder %s40, 0
      %p75 = por %p73, %p74
      %p76 = scmp.ne.s32.totalorder %s62, %s63
      %p77 = scmp.eq.s32.totalorder %s41, 1
      %p78 = por %p76, %p77
      %p80 = scmp.ne.s32.totalorder %s63, %s79
      %p81 = scmp.eq.s32.totalorder %s41, 0
      %p82 = por %p80, %p81
      %s83 = ssub.s32 %s42, %s54
      %p84 = scmp.eq.s32.totalorder %s83, 0
      %s86 = sadd.s32 %s85, 1
      %s87 = scalar_select %p84, %s85, %s86
      %p90 = pneg %p84
      %p91 = scmp.eq.s32.totalorder %s35, 1
      %p92 = por %p90, %p91
      %p93 = scmp.ne.s32.totalorder %s85, %s88
      %p94 = scmp.eq.s32.totalorder %s35, 0
      %p95 = por %p93, %p94
      %p96 = scmp.ne.s32.totalorder %s85, %s88
      %p97 = scmp.eq.s32.totalorder %s40, 1
      %p98 = por %p96, %p97
      %p99 = scmp.ne.s32.totalorder %s88, %s89
      %p100 = scmp.eq.s32.totalorder %s40, 0
      %p101 = por %p99, %p100
      %p102 = scmp.ne.s32.totalorder %s88, %s89
      %p103 = scmp.eq.s32.totalorder %s41, 1
      %p104 = por %p102, %p103
      %p106 = scmp.ne.s32.totalorder %s89, %s105
      %p107 = scmp.eq.s32.totalorder %s41, 0
      %p108 = por %p106, %p107
      %s109 = ssub.s32 %s42, %s54
      %p110 = scmp.eq.s32.totalorder %s109, 0
      %s112 = sadd.s32 %s111, 1
      %s113 = scalar_select %p110, %s111, %s112
      %p116 = pneg %p110
      %p117 = scmp.eq.s32.totalorder %s35, 1
      %p118 = por %p116, %p117
      %p119 = scmp.ne.s32.totalorder %s111, %s114
      %p120 = scmp.eq.s32.totalorder %s35, 0
      %p121 = por %p119, %p120
      %p122 = scmp.ne.s32.totalorder %s111, %s114
      %p123 = scmp.eq.s32.totalorder %s40, 1
      %p124 = por %p122, %p123
      %p125 = scmp.ne.s32.totalorder %s114, %s115
      %p126 = scmp.eq.s32.totalorder %s40, 0
      %p127 = por %p125, %p126
      %p128 = scmp.ne.s32.totalorder %s114, %s115
      %p129 = scmp.eq.s32.totalorder %s41, 1
      %p130 = por %p128, %p129
      %p132 = scmp.ne.s32.totalorder %s115, %s131
      %p133 = scmp.eq.s32.totalorder %s41, 0
      %p134 = por %p132, %p133
      %s135 = ssub.s32 %s42, %s54
      %s136 = ssub.s32 %s43, %s50
      %s137 = sor.u32 %s135, %s136
      %p138 = scmp.eq.s32.totalorder %s137, 0
      %s140 = sadd.s32 %s139, 1
      %s141 = scalar_select %p138, %s139, %s140
      %p144 = pneg %p138
      %p145 = scmp.eq.s32.totalorder %s35, 1
      %p146 = por %p144, %p145
      %p147 = scmp.ne.s32.totalorder %s139, %s142
      %p148 = scmp.eq.s32.totalorder %s35, 0
      %p149 = por %p147, %p148
      %p150 = scmp.ne.s32.totalorder %s139, %s142
      %p151 = scmp.eq.s32.totalorder %s40, 1
      %p152 = por %p150, %p151
      %p153 = scmp.ne.s32.totalorder %s142, %s143
      %p154 = scmp.eq.s32.totalorder %s40, 0
      %p155 = por %p153, %p154
      %p156 = scmp.ne.s32.totalorder %s142, %s143
      %p157 = scmp.eq.s32.totalorder %s41, 1
      %p158 = por %p156, %p157
      %p160 = scmp.ne.s32.totalorder %s143, %s159
      %p161 = scmp.eq.s32.totalorder %s41, 0
      %p162 = por %p160, %p161
      %s163 = ssub.s32 %s42, %s54
      %p164 = scmp.eq.s32.totalorder %s163, 0
      %s166 = sadd.s32 %s165, 1
      %s167 = scalar_select %p164, %s165, %s166
      %p170 = pneg %p164
      %p171 = scmp.eq.s32.totalorder %s35, 1
      %p172 = por %p170, %p171
      %p173 = scmp.ne.s32.totalorder %s165, %s168
      %p174 = scmp.eq.s32.totalorder %s35, 0
      %p175 = por %p173, %p174
      %p176 = scmp.ne.s32.totalorder %s165, %s168
      %p177 = scmp.eq.s32.totalorder %s40, 1
      %p178 = por %p176, %p177
      %p179 = scmp.ne.s32.totalorder %s168, %s169
      %p180 = scmp.eq.s32.totalorder %s40, 0
      %p181 = por %p179, %p180
      %p182 = scmp.ne.s32.totalorder %s168, %s169
      %p183 = scmp.eq.s32.totalorder %s41, 1
      %p184 = por %p182, %p183
      %p186 = scmp.ne.s32.totalorder %s169, %s185
      %p187 = scmp.eq.s32.totalorder %s41, 0
      %p188 = por %p186, %p187
      %s190 = sadd.s32 %s189, 1
      %p193 = scmp.eq.s32.totalorder %s35, 1
      %p194 = scmp.ne.s32.totalorder %s189, %s191
      %p195 = scmp.eq.s32.totalorder %s35, 0
      %p196 = por %p194, %p195
      %p197 = scmp.ne.s32.totalorder %s189, %s191
      %p198 = scmp.eq.s32.totalorder %s40, 1
      %p199 = por %p197, %p198
      %p200 = scmp.ne.s32.totalorder %s191, %s192
      %p201 = scmp.eq.s32.totalorder %s40, 0
      %p202 = por %p200, %p201
      %p203 = scmp.ne.s32.totalorder %s191, %s192
      %p204 = scmp.eq.s32.totalorder %s41, 1
      %p205 = por %p203, %p204
      %p207 = scmp.ne.s32.totalorder %s192, %s206
      %p208 = scmp.eq.s32.totalorder %s41, 0
      %p209 = por %p207, %p208
      %s211 = sadd.s32 %s210, 1
      %p214 = scmp.eq.s32.totalorder %s35, 1
      %p215 = scmp.ne.s32.totalorder %s210, %s212
      %p216 = scmp.eq.s32.totalorder %s35, 0
      %p217 = por %p215, %p216
      %p218 = scmp.ne.s32.totalorder %s210, %s212
      %p219 = scmp.eq.s32.totalorder %s40, 1
      %p220 = por %p218, %p219
      %p221 = scmp.ne.s32.totalorder %s212, %s213
      %p222 = scmp.eq.s32.totalorder %s40, 0
      %p223 = por %p221, %p222
      %p224 = scmp.ne.s32.totalorder %s212, %s213
      %p225 = scmp.eq.s32.totalorder %s41, 1
      %p226 = por %p224, %p225
      %p228 = scmp.ne.s32.totalorder %s213, %s227
      %p229 = scmp.eq.s32.totalorder %s41, 0
      %p230 = por %p228, %p229
      %s232 = sadd.s32 %s231, 1
      %p235 = scmp.eq.s32.totalorder %s35, 1
      %p236 = scmp.ne.s32.totalorder %s231, %s233
      %p237 = scmp.eq.s32.totalorder %s35, 0
      %p238 = por %p236, %p237
      %p239 = scmp.ne.s32.totalorder %s231, %s233
      %p240 = scmp.eq.s32.totalorder %s40, 1
      %p241 = por %p239, %p240
      %p242 = scmp.ne.s32.totalorder %s233, %s234
      %p243 = scmp.eq.s32.totalorder %s40, 0
      %p244 = por %p242, %p243
      %p245 = scmp.ne.s32.totalorder %s233, %s234
      %p246 = scmp.eq.s32.totalorder %s41, 1
      %p247 = por %p245, %p246
      %p249 = scmp.ne.s32.totalorder %s234, %s248
      %p250 = scmp.eq.s32.totalorder %s41, 0
      %p251 = por %p249, %p250
      %s253 = sadd.s32 %s252, 1
      %p256 = scmp.eq.s32.totalorder %s35, 1
      %p257 = scmp.ne.s32.totalorder %s252, %s254
      %p258 = scmp.eq.s32.totalorder %s35, 0
      %p259 = por %p257, %p258
      %p260 = scmp.ne.s32.totalorder %s252, %s254
      %p261 = scmp.eq.s32.totalorder %s40, 1
      %p262 = por %p260, %p261
      %p263 = scmp.ne.s32.totalorder %s254, %s255
      %p264 = scmp.eq.s32.totalorder %s40, 0
      %p265 = por %p263, %p264
      %p266 = scmp.ne.s32.totalorder %s254, %s255
      %p267 = scmp.eq.s32.totalorder %s41, 1
      %p268 = por %p266, %p267
      %p270 = scmp.ne.s32.totalorder %s255, %s269
      %p271 = scmp.eq.s32.totalorder %s41, 0
      %p272 = por %p270, %p271
      %s274 = sadd.s32 %s273, 1
      %p277 = scmp.eq.s32.totalorder %s35, 1
      %p278 = scmp.ne.s32.totalorder %s273, %s275
      %p279 = scmp.eq.s32.totalorder %s35, 0
      %p280 = por %p278, %p279
      %p281 = scmp.ne.s32.totalorder %s273, %s275
      %p282 = scmp.eq.s32.totalorder %s40, 1
      %p283 = por %p281, %p282
      %p284 = scmp.ne.s32.totalorder %s275, %s276
      %p285 = scmp.eq.s32.totalorder %s40, 0
      %p286 = por %p284, %p285
      %p287 = scmp.ne.s32.totalorder %s275, %s276
      %p288 = scmp.eq.s32.totalorder %s41, 1
      %p289 = por %p287, %p288
      %p291 = scmp.ne.s32.totalorder %s276, %s290
      %p292 = scmp.eq.s32.totalorder %s41, 0
      %p293 = por %p291, %p292
      %s295 = sadd.s32 %s294, 1
      %p298 = scmp.eq.s32.totalorder %s35, 1
      %p299 = scmp.ne.s32.totalorder %s294, %s296
      %p300 = scmp.eq.s32.totalorder %s35, 0
      %p301 = por %p299, %p300
      %p302 = scmp.ne.s32.totalorder %s294, %s296
      %p303 = scmp.eq.s32.totalorder %s40, 1
      %p304 = por %p302, %p303
      %p305 = scmp.ne.s32.totalorder %s296, %s297
      %p306 = scmp.eq.s32.totalorder %s40, 0
      %p307 = por %p305, %p306
      %p308 = scmp.ne.s32.totalorder %s296, %s297
      %p309 = scmp.eq.s32.totalorder %s41, 1
      %p310 = por %p308, %p309
      %p312 = scmp.ne.s32.totalorder %s297, %s311
      %p313 = scmp.eq.s32.totalorder %s41, 0
      %p314 = por %p312, %p313
      %s316 = sadd.s32 %s315, 1
      %p319 = scmp.eq.s32.totalorder %s35, 1
      %p320 = scmp.ne.s32.totalorder %s315, %s317
      %p321 = scmp.eq.s32.totalorder %s35, 0
      %p322 = por %p320, %p321
      %p323 = scmp.ne.s32.totalorder %s315, %s317
      %p324 = scmp.eq.s32.totalorder %s40, 1
      %p325 = por %p323, %p324
      %p326 = scmp.ne.s32.totalorder %s317, %s318
      %p327 = scmp.eq.s32.totalorder %s40, 0
      %p328 = por %p326, %p327
      %p329 = scmp.ne.s32.totalorder %s317, %s318
      %p330 = scmp.eq.s32.totalorder %s41, 1
      %p331 = por %p329, %p330
      %p333 = scmp.ne.s32.totalorder %s318, %s332
      %p334 = scmp.eq.s32.totalorder %s41, 0
      %p335 = por %p333, %p334
      %s337 = sadd.s32 %s336, 1
      %p340 = scmp.eq.s32.totalorder %s35, 1
      %p341 = scmp.ne.s32.totalorder %s336, %s338
      %p342 = scmp.eq.s32.totalorder %s35, 0
      %p343 = por %p341, %p342
      %p344 = scmp.ne.s32.totalorder %s336, %s338
      %p345 = scmp.eq.s32.totalorder %s40, 1
      %p346 = por %p344, %p345
      %p347 = scmp.ne.s32.totalorder %s338, %s339
      %p348 = scmp.eq.s32.totalorder %s40, 0
      %p349 = por %p347, %p348
      %p350 = scmp.ne.s32.totalorder %s338, %s339
      %p351 = scmp.eq.s32.totalorder %s41, 1
      %p352 = por %p350, %p351
      %p354 = scmp.ne.s32.totalorder %s339, %s353
      %p355 = scmp.eq.s32.totalorder %s41, 0
      %p356 = por %p354, %p355
      %s357 = ssub.s32 %s42, %s54
      %s358 = ssub.s32 %s43, %s50
      %s359 = sor.u32 %s357, %s358
      %p360 = scmp.eq.s32.totalorder %s359, 0
      %s362 = sadd.s32 %s361, 1
      %s363 = scalar_select %p360, %s361, %s362
      %p366 = pneg %p360
      %p367 = scmp.eq.s32.totalorder %s35, 1
      %p368 = por %p366, %p367
      %p369 = scmp.ne.s32.totalorder %s361, %s364
      %p370 = scmp.eq.s32.totalorder %s35, 0
      %p371 = por %p369, %p370
      %p372 = scmp.ne.s32.totalorder %s361, %s364
      %p373 = scmp.eq.s32.totalorder %s40, 1
      %p374 = por %p372, %p373
      %p375 = scmp.ne.s32.totalorder %s364, %s365
      %p376 = scmp.eq.s32.totalorder %s40, 0
      %p377 = por %p375, %p376
      %p378 = scmp.ne.s32.totalorder %s364, %s365
      %p379 = scmp.eq.s32.totalorder %s41, 1
      %p380 = por %p378, %p379
      %p382 = scmp.ne.s32.totalorder %s365, %s381
      %p383 = scmp.eq.s32.totalorder %s41, 0
      %p384 = por %p382, %p383
      %s385 = ssub.s32 %s42, %s54
      %s386 = ssub.s32 %s43, %s50
      %s387 = sor.u32 %s385, %s386
      %p388 = scmp.eq.s32.totalorder %s387, 0
      %s390 = sadd.s32 %s389, 1
      %s391 = scalar_select %p388, %s389, %s390
      %p394 = pneg %p388
      %p395 = scmp.eq.s32.totalorder %s35, 1
      %p396 = por %p394, %p395
      %p397 = scmp.ne.s32.totalorder %s389, %s392
      %p398 = scmp.eq.s32.totalorder %s35, 0
      %p399 = por %p397, %p398
      %p400 = scmp.ne.s32.totalorder %s389, %s392
      %p401 = scmp.eq.s32.totalorder %s40, 1
      %p402 = por %p400, %p401
      %p403 = scmp.ne.s32.totalorder %s392, %s393
      %p404 = scmp.eq.s32.totalorder %s40, 0
      %p405 = por %p403, %p404
      %p406 = scmp.ne.s32.totalorder %s392, %s393
      %p407 = scmp.eq.s32.totalorder %s41, 1
      %p408 = por %p406, %p407
      %p410 = scmp.ne.s32.totalorder %s393, %s409
      %p411 = scmp.eq.s32.totalorder %s41, 0
      %p412 = por %p410, %p411
      %p413 = scmp.le.s32.totalorder 1, %s35
      %p414 = scmp.lt.s32.totalorder %s35, 3
      %p415 = pnand %p413, %p414
      %p416 = pneg %p415
      // Predicated region
      $region9: #{tpu_custom_call.1} parent=5 // pred_check
        _
      $region10: #{tpu_custom_call.1} parent=5 // pred_check_branch
        %418 = sbr.rel (%p415) target = $region12
      $region11: #{tpu_custom_call.1} parent=5 // pred_region
        %s419 = ssub.s32 %s35, 1
        // Predicated region
        $region13: #{tpu_custom_call.1} parent=11 // pred_check
          %p420 = pneg %p202
        $region14: #{tpu_custom_call.1} parent=11 // pred_check_branch
          %422 = sbr.rel (%p420) target = $region16
        $region15: #{tpu_custom_call.1} parent=11 // pred_region
          _
        $region16: #{tpu_custom_call.1} parent=11 // pred_fallthru
          _
        // Predicated region
        $region17: #{tpu_custom_call.1} parent=11 // pred_check
          %p423 = pneg %p223
        $region18: #{tpu_custom_call.1} parent=11 // pred_check_branch
          %425 = sbr.rel (%p423) target = $region20
        $region19: #{tpu_custom_call.1} parent=11 // pred_region
          _
        $region20: #{tpu_custom_call.1} parent=11 // pred_fallthru
          _
        // Predicated region
        $region21: #{tpu_custom_call.1} parent=11 // pred_check
          %p426 = pneg %p244
        $region22: #{tpu_custom_call.1} parent=11 // pred_check_branch
          %428 = sbr.rel (%p426) target = $region24
        $region23: #{tpu_custom_call.1} parent=11 // pred_region
          %430 = vsyncadd [#allocation12], 0
          %s431 = sshll.u32 %s7, 4
          %s432 = int_to_ptr.hbm [resolvable:$true] %s431
          %s433 = sshll.u32 [#allocation11], 4
          %s434 = int_to_ptr.vmem [resolvable:$true] %s433
          %439 = dma.hbm_to_vmem [thread:$0]  %s432, 256, %s434, [#allocation12], 64, 64, 4
        $region24: #{tpu_custom_call.1} parent=11 // pred_fallthru
          _
        // Predicated region
        $region25: #{tpu_custom_call.1} parent=11 // pred_check
          %p440 = pneg %p265
        $region26: #{tpu_custom_call.1} parent=11 // pred_check_branch
          %442 = sbr.rel (%p440) target = $region28
        $region27: #{tpu_custom_call.1} parent=11 // pred_region
          _
        $region28: #{tpu_custom_call.1} parent=11 // pred_fallthru
          _
        // Predicated region
        $region29: #{tpu_custom_call.1} parent=11 // pred_check
          %p443 = pneg %p286
        $region30: #{tpu_custom_call.1} parent=11 // pred_check_branch
          %445 = sbr.rel (%p443) target = $region32
        $region31: #{tpu_custom_call.1} parent=11 // pred_region
          %447 = vsyncadd [#allocation12], 0
          %s448 = sshll.u32 %s9, 4
          %s449 = int_to_ptr.hbm [resolvable:$true] %s448
          %s450 = sshll.u32 [#allocation13], 4
          %s451 = int_to_ptr.vmem [resolvable:$true] %s450
          %456 = dma.hbm_to_vmem [thread:$0]  %s449, 256, %s451, [#allocation12], 64, 64, 4
        $region32: #{tpu_custom_call.1} parent=11 // pred_fallthru
          _
        // Predicated region
        $region33: #{tpu_custom_call.1} parent=11 // pred_check
          %p457 = pneg %p307
        $region34: #{tpu_custom_call.1} parent=11 // pred_check_branch
          %459 = sbr.rel (%p457) target = $region36
        $region35: #{tpu_custom_call.1} parent=11 // pred_region
          _
        $region36: #{tpu_custom_call.1} parent=11 // pred_fallthru
          _
        // Predicated region
        $region37: #{tpu_custom_call.1} parent=11 // pred_check
          %p460 = pneg %p328
        $region38: #{tpu_custom_call.1} parent=11 // pred_check_branch
          %462 = sbr.rel (%p460) target = $region40
        $region39: #{tpu_custom_call.1} parent=11 // pred_region
          %464 = vsyncadd [#allocation15], 0
          %s465 = sshll.u32 %s11, 4
          %s466 = int_to_ptr.hbm [resolvable:$true] %s465
          %s467 = sshll.u32 [#allocation14], 4
          %s468 = int_to_ptr.vmem [resolvable:$true] %s467
          %473 = dma.hbm_to_vmem [thread:$0]  %s466, 256, %s468, [#allocation15], 64, 64, 4
        $region40: #{tpu_custom_call.1} parent=11 // pred_fallthru
          _
        // Predicated region
        $region41: #{tpu_custom_call.1} parent=11 // pred_check
          %p474 = pneg %p349
        $region42: #{tpu_custom_call.1} parent=11 // pred_check_branch
          %476 = sbr.rel (%p474) target = $region44
        $region43: #{tpu_custom_call.1} parent=11 // pred_region
          _
        $region44: #{tpu_custom_call.1} parent=11 // pred_fallthru
          _
      $region12: #{tpu_custom_call.1} parent=5 // pred_fallthru
        _
      %p477 = scmp.lt.s32.totalorder %s35, 2
      // Predicated region
      $region45: #{tpu_custom_call.1} parent=5 // pred_check
        %p478 = pneg %p477
      $region46: #{tpu_custom_call.1} parent=5 // pred_check_branch
        %480 = sbr.rel (%p478) target = $region48
      $region47: #{tpu_custom_call.1} parent=5 // pred_region
        // Predicated region
        $region49: #{tpu_custom_call.1} parent=47 // pred_check
          %p481 = pneg %p69
        $region50: #{tpu_custom_call.1} parent=47 // pred_check_branch
          %483 = sbr.rel (%p481) target = $region52
        $region51: #{tpu_custom_call.1} parent=47 // pred_region
          %s484 = sand.u32 %s59, 1
          %s485 = scalar_lea.sflag [#allocation6], %s484
          %s486 = sand.u32 %s59, 1
          %s487 = smul.addr %s486, 4
          %s488 = scalar_lea.vmem [#allocation5], %s487
          %490 = vsyncadd %s485, 0
          %s491 = sadd.s32 %s43, %s42
          %s492 = smul.addr %s491, 4
          %s493 = scalar_lea.hbm %s0, %s492
          %s495 = sshll.u32 %s493, 4
          %s496 = int_to_ptr.hbm [resolvable:$true] %s495
          %s497 = sshll.u32 %s488, 4
          %s498 = int_to_ptr.vmem [resolvable:$true] %s497
          %500 = dma.hbm_to_vmem [thread:$0]  %s496, 64, %s498, %s485
        $region52: #{tpu_custom_call.1} parent=47 // pred_fallthru
          _
        // Predicated region
        $region53: #{tpu_custom_call.1} parent=47 // pred_check
          %p501 = pneg %p95
        $region54: #{tpu_custom_call.1} parent=47 // pred_check_branch
          %503 = sbr.rel (%p501) target = $region56
        $region55: #{tpu_custom_call.1} parent=47 // pred_region
          %s504 = sand.u32 %s35, 1
          %s505 = scalar_lea.sflag [#allocation9], %s504
          %s506 = sand.u32 %s85, 1
          %s507 = smul.addr %s506, 4
          %s508 = scalar_lea.vmem [#allocation8], %s507
          %510 = vsyncadd %s505, 0
          %s511 = smul.addr %s42, 4
          %s512 = scalar_lea.hbm %s1, %s511
          %s514 = sshll.u32 %s512, 4
          %s515 = int_to_ptr.hbm [resolvable:$true] %s514
          %s516 = sshll.u32 %s508, 4
          %s517 = int_to_ptr.vmem [resolvable:$true] %s516
          %519 = dma.hbm_to_vmem [thread:$0]  %s515, 64, %s517, %s505
        $region56: #{tpu_custom_call.1} parent=47 // pred_fallthru
          _
        // Predicated region
        $region57: #{tpu_custom_call.1} parent=47 // pred_check
          %p520 = pneg %p121
        $region58: #{tpu_custom_call.1} parent=47 // pred_check_branch
          %522 = sbr.rel (%p520) target = $region60
        $region59: #{tpu_custom_call.1} parent=47 // pred_region
          %s523 = sand.u32 %s35, 1
          %s524 = scalar_lea.sflag [#allocation9], %s523
          %s525 = sand.u32 %s111, 1
          %s526 = smul.addr %s525, 4
          %s527 = scalar_lea.vmem [#allocation10], %s526
          %529 = vsyncadd %s524, 0
          %s530 = smul.addr %s42, 4
          %s531 = scalar_lea.hbm %s2, %s530
          %s533 = sshll.u32 %s531, 4
          %s534 = int_to_ptr.hbm [resolvable:$true] %s533
          %s535 = sshll.u32 %s527, 4
          %s536 = int_to_ptr.vmem [resolvable:$true] %s535
          %538 = dma.hbm_to_vmem [thread:$0]  %s534, 64, %s536, %s524
        $region60: #{tpu_custom_call.1} parent=47 // pred_fallthru
          _
        // Predicated region
        $region61: #{tpu_custom_call.1} parent=47 // pred_check
          %p539 = pneg %p149
        $region62: #{tpu_custom_call.1} parent=47 // pred_check_branch
          %541 = sbr.rel (%p539) target = $region64
        $region63: #{tpu_custom_call.1} parent=47 // pred_region
          %p542 = scmp.lt.s32.totalorder %s42, 1
          %s543 = scalar_select %p542, %s42, 1
          %p544 = scmp.lt.s32.totalorder %s43, 0
          %s545 = scalar_select %p544, %s43, 0
          %s546 = sadd.s32 %s545, %s543
          %s547 = smul.addr %s546, 8
          %s548 = scalar_lea.vmem %s3, %s547
        $region64: #{tpu_custom_call.1} parent=47 // pred_fallthru
          _
        // Predicated region
        $region65: #{tpu_custom_call.1} parent=47 // pred_check
          %p549 = pneg %p175
        $region66: #{tpu_custom_call.1} parent=47 // pred_check_branch
          %551 = sbr.rel (%p549) target = $region68
        $region67: #{tpu_custom_call.1} parent=47 // pred_region
          %p552 = scmp.lt.s32.totalorder %s42, 1
          %s553 = scalar_select %p552, %s42, 1
          %s554 = scalar_lea.vmem %s4, %s553
        $region68: #{tpu_custom_call.1} parent=47 // pred_fallthru
          _
      $region48: #{tpu_custom_call.1} parent=5 // pred_fallthru
        _
      %p555 = scmp.le.s32.totalorder 1, %s35
      %p556 = scmp.lt.s32.totalorder %s35, 3
      %p557 = pnand %p555, %p556
      %p558 = pneg %p557
      // Predicated region
      $region69: #{tpu_custom_call.1} parent=5 // pred_check
        _
      $region70: #{tpu_custom_call.1} parent=5 // pred_check_branch
        %560 = sbr.rel (%p557) target = $region72
      $region71: #{tpu_custom_call.1} parent=5 // pred_region
        %s561 = ssub.s32 %s35, 1
        %s562 = sand.u32 %s62, 1
        %s563 = scalar_lea.sflag [#allocation6], %s562
        %s564 = sand.u32 %s62, 1
        %s565 = smul.addr %s564, 4
        %s566 = scalar_lea.vmem [#allocation5], %s565
        // Predicated region
        $region73: #{tpu_custom_call.1} parent=71 // pred_check
          %p567 = pneg %p75
        $region74: #{tpu_custom_call.1} parent=71 // pred_check_branch
          %569 = sbr.rel (%p567) target = $region76
        $region75: #{tpu_custom_call.1} parent=71 // pred_region
          %571 = dma.done %s563, 64
        $region76: #{tpu_custom_call.1} parent=71 // pred_fallthru
          _
        %s572 = sand.u32 %s40, 1
        %s573 = scalar_lea.sflag [#allocation9], %s572
        %s574 = sand.u32 %s88, 1
        %s575 = smul.addr %s574, 4
        %s576 = scalar_lea.vmem [#allocation8], %s575
        // Predicated region
        $region77: #{tpu_custom_call.1} parent=71 // pred_check
          %p577 = pneg %p101
        $region78: #{tpu_custom_call.1} parent=71 // pred_check_branch
          %579 = sbr.rel (%p577) target = $region80
        $region79: #{tpu_custom_call.1} parent=71 // pred_region
          %581 = dma.done %s573, 64
        $region80: #{tpu_custom_call.1} parent=71 // pred_fallthru
          _
        %s582 = sand.u32 %s40, 1
        %s583 = scalar_lea.sflag [#allocation9], %s582
        %s584 = sand.u32 %s114, 1
        %s585 = smul.addr %s584, 4
        %s586 = scalar_lea.vmem [#allocation10], %s585
        // Predicated region
        $region81: #{tpu_custom_call.1} parent=71 // pred_check
          %p587 = pneg %p127
        $region82: #{tpu_custom_call.1} parent=71 // pred_check_branch
          %589 = sbr.rel (%p587) target = $region84
        $region83: #{tpu_custom_call.1} parent=71 // pred_region
          %591 = dma.done %s583, 64
        $region84: #{tpu_custom_call.1} parent=71 // pred_fallthru
          _
        // Predicated region
        $region85: #{tpu_custom_call.1} parent=71 // pred_check
          %p592 = pneg %p244
        $region86: #{tpu_custom_call.1} parent=71 // pred_check_branch
          %594 = sbr.rel (%p592) target = $region88
        $region87: #{tpu_custom_call.1} parent=71 // pred_region
          %596 = dma.done [#allocation12], 256
        $region88: #{tpu_custom_call.1} parent=71 // pred_fallthru
          _
        // Predicated region
        $region89: #{tpu_custom_call.1} parent=71 // pred_check
          %p597 = pneg %p286
        $region90: #{tpu_custom_call.1} parent=71 // pred_check_branch
          %599 = sbr.rel (%p597) target = $region92
        $region91: #{tpu_custom_call.1} parent=71 // pred_region
          %601 = dma.done [#allocation12], 256
        $region92: #{tpu_custom_call.1} parent=71 // pred_fallthru
          _
        // Predicated region
        $region93: #{tpu_custom_call.1} parent=71 // pred_check
          %p602 = pneg %p328
        $region94: #{tpu_custom_call.1} parent=71 // pred_check_branch
          %604 = sbr.rel (%p602) target = $region96
        $region95: #{tpu_custom_call.1} parent=71 // pred_region
          %606 = dma.done [#allocation15], 256
        $region96: #{tpu_custom_call.1} parent=71 // pred_fallthru
          _
        %s607 = sand.u32 %s62, 1
        %s608 = scalar_lea.sflag [#allocation6], %s607
        %s609 = sand.u32 %s62, 1
        %s610 = smul.addr %s609, 4
        %s611 = scalar_lea.vmem [#allocation5], %s610
        %p612 = pneg %p75
        %p613 = pneg %p72
        %s614 = sand.u32 %s40, 1
        %s615 = scalar_lea.sflag [#allocation9], %s614
        %s616 = sand.u32 %s88, 1
        %s617 = smul.addr %s616, 4
        %s618 = scalar_lea.vmem [#allocation8], %s617
        %p619 = pneg %p101
        %p620 = pneg %p98
        %s621 = sand.u32 %s40, 1
        %s622 = scalar_lea.sflag [#allocation9], %s621
        %s623 = sand.u32 %s114, 1
        %s624 = smul.addr %s623, 4
        %s625 = scalar_lea.vmem [#allocation10], %s624
        %p626 = pneg %p127
        %p627 = pneg %p124
        %p628 = scmp.lt.s32.totalorder %s44, 1
        %s629 = scalar_select %p628, %s44, 1
        %p630 = scmp.lt.s32.totalorder %s45, 0
        %s631 = scalar_select %p630, %s45, 0
        %s632 = sadd.s32 %s631, %s629
        %s633 = smul.addr %s632, 8
        %s634 = scalar_lea.vmem %s3, %s633
        %p635 = pneg %p155
        %p636 = pneg %p152
        %p637 = scmp.lt.s32.totalorder %s44, 1
        %s638 = scalar_select %p637, %s44, 1
        %s639 = scalar_lea.vmem %s4, %s638
        %p640 = pneg %p181
        %p641 = pneg %p178
        %p642 = pneg %p202
        %p643 = pneg %p199
        %p644 = pneg %p223
        %p645 = pneg %p220
        %p646 = pneg %p244
        %p647 = pneg %p241
        %p648 = pneg %p265
        %p649 = pneg %p262
        %p650 = pneg %p286
        %p651 = pneg %p283
        %p652 = pneg %p307
        %p653 = pneg %p304
        %p654 = pneg %p328
        %p655 = pneg %p325
        %p656 = pneg %p349
        %p657 = pneg %p346
        %p658 = pneg %p377
        %p659 = pneg %p374
        %s660 = sand.u32 %s364, 1
        %s661 = scalar_lea.sflag [#allocation7], %s660
        %s662 = sand.u32 %s364, 1
        %s663 = smul.addr %s662, 8
        %s664 = scalar_lea.vmem [#allocation16], %s663
        %p665 = pneg %p405
        %p666 = pneg %p402
        %s667 = sand.u32 %s392, 1
        %s668 = scalar_lea.sflag [#allocation18], %s667
        %s669 = sand.u32 %s392, 1
        %s670 = smul.addr %s669, 16
        %s671 = scalar_lea.vmem [#allocation17], %s670
        %p672 = scmp.lt.s32.totalorder %s44, 1
        %s673 = scalar_select %p672, %s44, 1
        %p674 = scmp.lt.s32.totalorder %s45, 0
        %s675 = scalar_select %p674, %s45, 0
        %s676 = sadd.s32 %s675, %s673
        %s677 = smul.addr %s676, 8
        %s678 = scalar_lea.vmem %s3, %s677
        %p679 = scmp.lt.s32.totalorder %s44, 1
        %s680 = scalar_select %p679, %s44, 1
        %s681 = scalar_lea.vmem %s4, %s680
        %v683 = vld [vmem:[%s678] sm:$0xff]
        %v684 = vsub.f32 1.0, %v683
        %v685 = vld [vmem:[%s681] sm:$0x1]
        %vm686 = vcmp.gt.f32.partialorder %v685, 0.0
        %p687 = scmp.eq.s32.totalorder %s45, 0
        // Predicated region
        $region97: #{tpu_custom_call.1} parent=71 // pred_check
          %p688 = pneg %p687
        $region98: #{tpu_custom_call.1} parent=71 // pred_check_branch
          %690 = sbr.rel (%p688) target = $region100
        $region99: #{tpu_custom_call.1} parent=71 // pred_region
          %v691 = vld [vmem:[%s576] sm:$0xf]
          %v692 = vld [vmem:[#allocation11] sm:$0xf]
          %v693 = vld [vmem:[#allocation11 + $0x4] sm:$0xf]
          %v694 = vld [vmem:[#allocation11 + $0x8] sm:$0xf]
          %v695 = vld [vmem:[#allocation11 + $0xc] sm:$0xf]
          %v696 = vld [vmem:[%s8] sm:$0x1]
          %v698 = vperm.slane %v696, 0
          %v704 = vunpack.c.l.b16 %v692
          %v705 = vunpack.c.l.b16 %v693
          %v706 = vunpack.c.l.b16 %v694
          %v707 = vunpack.c.l.b16 %v695
          %v708 = vpack.c.b16 %v705, %v704
          %v709 = vpack.c.b16 %v707, %v706
          %vm712 = vcmask 261120
          %v714 = vsel %vm712, %v691, 0
          %716 = vmatpush.bf16.msra.mxu0 0
          %717 = vmatpush.bf16.msra.mxu0 0
          %718 = vmatpush.bf16.msra.mxu0 0
          %719 = vmatpush.bf16.msra.mxu0 0
          %720 = vmatpush.bf16.msra.mxu0 0
          %721 = vmatpush.bf16.msra.mxu0 0
          %722 = vmatpush.bf16.msra.mxu0 %v709
          %723 = vmatpush.bf16.msra.mxu0 %v708
          %724 = vmatmul.bf16.gmra.mxu0 %v714
          %v725 = vpop.f32.mrf.mxu0
          %v726 = vadd.f32 %v698, %v725
          %v727 = vpop.f32.mrf.mxu0
          %728 = vdwg.mxu0
          %v729 = vld [vmem:[%s586] sm:$0xf]
          %v730 = vld [vmem:[#allocation13] sm:$0xf]
          %v731 = vld [vmem:[#allocation13 + $0x4] sm:$0xf]
          %v732 = vld [vmem:[#allocation13 + $0x8] sm:$0xf]
          %v733 = vld [vmem:[#allocation13 + $0xc] sm:$0xf]
          %v734 = vld [vmem:[%s10] sm:$0x1]
          %v736 = vperm.slane %v734, 0
          %v742 = vunpack.c.l.b16 %v730
          %v743 = vunpack.c.l.b16 %v731
          %v744 = vunpack.c.l.b16 %v732
          %v745 = vunpack.c.l.b16 %v733
          %v746 = vpack.c.b16 %v743, %v742
          %v747 = vpack.c.b16 %v745, %v744
          %v751 = vsel %vm712, %v729, 0
          %753 = vmatpush.bf16.msra.mxu0 0
          %754 = vmatpush.bf16.msra.mxu0 0
          %755 = vmatpush.bf16.msra.mxu0 0
          %756 = vmatpush.bf16.msra.mxu0 0
          %757 = vmatpush.bf16.msra.mxu0 0
          %758 = vmatpush.bf16.msra.mxu0 0
          %759 = vmatpush.bf16.msra.mxu0 %v747
          %760 = vmatpush.bf16.msra.mxu0 %v746
          %761 = vmatmul.bf16.gmra.mxu0 %v751
          %v762 = vpop.f32.mrf.mxu0
          %v763 = vadd.f32 %v736, %v762
          %v764 = vpop.f32.mrf.mxu0
          %765 = vdwg.mxu0
          %v766 = vpack.c.bf16 %v726, %v726
          %vm767 = vcmask 257024
          %768 = vst.msk [vmem:[#allocation2] sm:$0xf] %vm767, %v766
          %v769 = vpack.c.bf16 %v763, %v763
          %770 = vst.msk [vmem:[#allocation3] sm:$0xf] %vm767, %v769
        $region100: #{tpu_custom_call.1} parent=71 // pred_fallthru
          _
        %v771 = vld [vmem:[%s566] sm:$0xf]
        %v772 = vld [vmem:[%s5] sm:$0xf]
        %v773 = vld [vmem:[%s5 + $0x4] sm:$0xf]
        %v774 = vld [vmem:[%s5 + $0x8] sm:$0xf]
        %v775 = vld [vmem:[%s5 + $0xc] sm:$0xf]
        %v776 = vld [vmem:[%s6] sm:$0x1]
        %v778 = vperm.slane %v776, 0
        %v784 = vunpack.c.l.b16 %v772
        %v785 = vunpack.c.l.b16 %v773
        %v786 = vunpack.c.l.b16 %v774
        %v787 = vunpack.c.l.b16 %v775
        %v788 = vpack.c.b16 %v785, %v784
        %v789 = vpack.c.b16 %v787, %v786
        %vm792 = vcmask 261120
        %v794 = vsel %vm792, %v771, 0
        %796 = vmatpush.bf16.msra.mxu0 0
        %797 = vmatpush.bf16.msra.mxu0 0
        %798 = vmatpush.bf16.msra.mxu0 0
        %799 = vmatpush.bf16.msra.mxu0 0
        %800 = vmatpush.bf16.msra.mxu0 0
        %801 = vmatpush.bf16.msra.mxu0 0
        %802 = vmatpush.bf16.msra.mxu0 %v789
        %803 = vmatpush.bf16.msra.mxu0 %v788
        %804 = vmatmul.bf16.gmra.mxu0 %v794
        %v805 = vpop.f32.mrf.mxu0
        %v806 = vadd.f32 %v778, %v805
        %v807 = vpop.f32.mrf.mxu0
        %808 = vdwg.mxu0
        %810 = vset.pattern.permute.xlu0 0
        %811 = vperm.xlu0 %810, %v684
        %v812 = vpop.permute.xlu0 %811
        %v814 = vmul.f32 %v806, %v812
        %v815 = vmul.f32 %v814, 0.35355338
        %v816 = vpack.c.bf16 %v815, %v815
        %v817 = vld [vmem:[#allocation2] sm:$0xf]
        %v818 = vld [vmem:[#allocation3] sm:$0xf]
        %vm819 = vcmask 64512
        %v821 = vsel %vm819, %v816, 0
        %v824 = vsel %vm819, %v817, 0
        %826 = vmatpush.bf16.xpose.msra.mxu0 0
        %827 = vmatpush.bf16.xpose.msra.mxu0 0
        %828 = vmatpush.bf16.xpose.msra.mxu0 0
        %829 = vmatpush.bf16.xpose.msra.mxu0 0
        %830 = vmatpush.bf16.xpose.msra.mxu0 0
        %831 = vmatpush.bf16.xpose.msra.mxu0 0
        %832 = vmatpush.bf16.xpose.msra.mxu0 0
        %833 = vmatpush.bf16.xpose.msra.mxu0 %v824
        %834 = vmatmul.bf16.gmra.mxu0 %v821
        %v835 = vpop.f32.mrf.mxu0
        %v836 = vadd.f32 0.0, %v835
        %v837 = vpop.f32.mrf.mxu0
        %838 = vdwg.mxu0
        %v839 = vsel %vm686, 1, 0
        %v840 = vperm.slane %v839, 0
        %vm841 = vcmp.eq.s32.totalorder %v840, 1
        %v842 = vsel %vm841, -inf, %v836
        %v843 = vsel %vm819, %v842, -inf
        %844 = vmax.xlane.f32.xlu0 %v843
        %v845 = vpop.xlane.xlu0 %844
        %v846 = vsub.f32 %v842, %v845
        %v847 = vmul.f32 %v846, 1.442695
        %v848 = vpow.pop %v847
        %v849 = vsel %vm819, %v848, 0.0
        %850 = vadd.xlane.f32.xlu0 %v849
        %v851 = vpop.xlane.xlu0 %850
        %v852 = vrcp.pop %v851
        %v853 = vmul.f32 %v851, %v852
        %v854 = vsub.f32 1.0, %v853
        %v855 = vmul.f32 %v852, %v854
        %v856 = vadd.f32 %v852, %v855
        %vm857 = vweird.f32 %v851
        %vm858 = vweird.f32 %v852
        %vm859 = vmor %vm857, %vm858
        %v860 = vsel %vm859, %v852, %v856
        %v861 = vand.u32 2147483647, %v851
        %vm862 = vcmp.eq.f32.partialorder %v861, 8.507059e+37
        %v863 = vand.u32 %v851, 2147483648
        %v864 = vor.u32 1.1754944e-38, %v863
        %v865 = vsel %vm862, %v864, %v860
        %v866 = vmul.f32 1.0, %v865
        %v867 = vmul.f32 %v848, %v866
        %v868 = vpack.c.bf16 %v867, %v867
        %vm869 = vcmask 60416
        %870 = vst.msk [vmem:[%s671] sm:$0xf] %vm869, %v868
        %v872 = vsel %vm819, %v868, 0
        %vm874 = vcmask 1043456
        %v876 = vsel %vm874, %v818, 0
        %878 = vmatpush.bf16.msra.mxu0 0
        %879 = vmatpush.bf16.msra.mxu0 0
        %880 = vmatpush.bf16.msra.mxu0 0
        %881 = vmatpush.bf16.msra.mxu0 0
        %882 = vmatpush.bf16.msra.mxu0 0
        %883 = vmatpush.bf16.msra.mxu0 0
        %884 = vmatpush.bf16.msra.mxu0 0
        %885 = vmatpush.bf16.msra.mxu0 %v876
        %886 = vmatmul.bf16.gmra.mxu0 %v872
        %v887 = vpop.f32.mrf.mxu0
        %v888 = vadd.f32 0.0, %v887
        %v889 = vpop.f32.mrf.mxu0
        %890 = vdwg.mxu0
        %v891 = vpack.c.bf16 %v888, %v888
        %892 = vst.msk [vmem:[#allocation4] sm:$0xf] %vm869, %v891
        %v893 = vld [vmem:[#allocation2] sm:$0xf]
        %v894 = vld [vmem:[#allocation3] sm:$0xf]
        %v896 = vunpack.c.l.b16 %v816
        %v897 = vpack.c.b16 %v896, %v896
        %898 = vrot.lane.b32.xlu0 %v897, 120
        %v899 = vpop.permute.xlu0 %898
        %v901 = vunpack.c.l.b16 %v893
        %v902 = vpack.c.b16 %v901, %v901
        %903 = vrot.lane.b32.xlu0 %v902, 120
        %v904 = vpop.permute.xlu0 %903
        %v906 = vsel %vm819, %v899, 0
        %v909 = vsel %vm819, %v904, 0
        %911 = vmatpush.bf16.xpose.msra.mxu0 0
        %912 = vmatpush.bf16.xpose.msra.mxu0 0
        %913 = vmatpush.bf16.xpose.msra.mxu0 0
        %914 = vmatpush.bf16.xpose.msra.mxu0 0
        %915 = vmatpush.bf16.xpose.msra.mxu0 0
        %916 = vmatpush.bf16.xpose.msra.mxu0 0
        %917 = vmatpush.bf16.xpose.msra.mxu0 0
        %918 = vmatpush.bf16.xpose.msra.mxu0 %v909
        %919 = vmatmul.bf16.gmra.mxu0 %v906
        %v920 = vpop.f32.mrf.mxu0
        %v921 = vadd.f32 0.0, %v920
        %v922 = vpop.f32.mrf.mxu0
        %923 = vdwg.mxu0
        %v924 = vsel %vm841, -inf, %v921
        %v925 = vsel %vm819, %v924, -inf
        %926 = vmax.xlane.f32.xlu0 %v925
        %v927 = vpop.xlane.xlu0 %926
        %v928 = vsub.f32 %v924, %v927
        %v929 = vmul.f32 %v928, 1.442695
        %v930 = vpow.pop %v929
        %v931 = vsel %vm819, %v930, 0.0
        %932 = vadd.xlane.f32.xlu0 %v931
        %v933 = vpop.xlane.xlu0 %932
        %v934 = vrcp.pop %v933
        %v935 = vmul.f32 %v933, %v934
        %v936 = vsub.f32 1.0, %v935
        %v937 = vmul.f32 %v934, %v936
        %v938 = vadd.f32 %v934, %v937
        %vm939 = vweird.f32 %v933
        %vm940 = vweird.f32 %v934
        %vm941 = vmor %vm939, %vm940
        %v942 = vsel %vm941, %v934, %v938
        %v943 = vand.u32 2147483647, %v933
        %vm944 = vcmp.eq.f32.partialorder %v943, 8.507059e+37
        %v945 = vand.u32 %v933, 2147483648
        %v946 = vor.u32 1.1754944e-38, %v945
        %v947 = vsel %vm944, %v946, %v942
        %v948 = vmul.f32 1.0, %v947
        %v949 = vmul.f32 %v930, %v948
        %v950 = vpack.c.bf16 %v949, %v949
        %s951 = scalar_lea.vmem %s671, 4 [#allocation17]
        %952 = vst.msk [vmem:[%s951] sm:$0xf] %vm869, %v950
        %v954 = vunpack.c.l.b16 %v894
        %v955 = vpack.c.b16 %v954, %v954
        %956 = vrot.lane.b32.xlu0 %v955, 120
        %v957 = vpop.permute.xlu0 %956
        %v959 = vsel %vm819, %v950, 0
        %v962 = vsel %vm874, %v957, 0
        %964 = vmatpush.bf16.msra.mxu0 0
        %965 = vmatpush.bf16.msra.mxu0 0
        %966 = vmatpush.bf16.msra.mxu0 0
        %967 = vmatpush.bf16.msra.mxu0 0
        %968 = vmatpush.bf16.msra.mxu0 0
        %969 = vmatpush.bf16.msra.mxu0 0
        %970 = vmatpush.bf16.msra.mxu0 0
        %971 = vmatpush.bf16.msra.mxu0 %v962
        %972 = vmatmul.bf16.gmra.mxu0 %v959
        %v973 = vpop.f32.mrf.mxu0
        %v974 = vadd.f32 0.0, %v973
        %v975 = vpop.f32.mrf.mxu0
        %976 = vdwg.mxu0
        %v977 = vpack.c.bf16 %v974, %v974
        %979 = vrot.lane.b32.xlu0 %v977, 8
        %v980 = vpop.permute.xlu0 %979
        %vm982 = vcmask 126016
        %983 = vst.msk [vmem:[#allocation4] sm:$0xf] %vm982, %v980
        %v984 = vld [vmem:[#allocation2] sm:$0xf]
        %v985 = vld [vmem:[#allocation3] sm:$0xf]
        %986 = vrot.lane.b32.xlu0 %v897, 112
        %v987 = vpop.permute.xlu0 %986
        %v989 = vunpack.c.l.b16 %v984
        %v990 = vpack.c.b16 %v989, %v989
        %991 = vrot.lane.b32.xlu0 %v990, 112
        %v992 = vpop.permute.xlu0 %991
        %v994 = vsel %vm819, %v987, 0
        %v997 = vsel %vm819, %v992, 0
        %999 = vmatpush.bf16.xpose.msra.mxu0 0
        %1000 = vmatpush.bf16.xpose.msra.mxu0 0
        %1001 = vmatpush.bf16.xpose.msra.mxu0 0
        %1002 = vmatpush.bf16.xpose.msra.mxu0 0
        %1003 = vmatpush.bf16.xpose.msra.mxu0 0
        %1004 = vmatpush.bf16.xpose.msra.mxu0 0
        %1005 = vmatpush.bf16.xpose.msra.mxu0 0
        %1006 = vmatpush.bf16.xpose.msra.mxu0 %v997
        %1007 = vmatmul.bf16.gmra.mxu0 %v994
        %v1008 = vpop.f32.mrf.mxu0
        %v1009 = vadd.f32 0.0, %v1008
        %v1010 = vpop.f32.mrf.mxu0
        %1011 = vdwg.mxu0
        %v1012 = vsel %vm841, -inf, %v1009
        %v1013 = vsel %vm819, %v1012, -inf
        %1014 = vmax.xlane.f32.xlu0 %v1013
        %v1015 = vpop.xlane.xlu0 %1014
        %v1016 = vsub.f32 %v1012, %v1015
        %v1017 = vmul.f32 %v1016, 1.442695
        %v1018 = vpow.pop %v1017
        %v1019 = vsel %vm819, %v1018, 0.0
        %1020 = vadd.xlane.f32.xlu0 %v1019
        %v1021 = vpop.xlane.xlu0 %1020
        %v1022 = vrcp.pop %v1021
        %v1023 = vmul.f32 %v1021, %v1022
        %v1024 = vsub.f32 1.0, %v1023
        %v1025 = vmul.f32 %v1022, %v1024
        %v1026 = vadd.f32 %v1022, %v1025
        %vm1027 = vweird.f32 %v1021
        %vm1028 = vweird.f32 %v1022
        %vm1029 = vmor %vm1027, %vm1028
        %v1030 = vsel %vm1029, %v1022, %v1026
        %v1031 = vand.u32 2147483647, %v1021
        %vm1032 = vcmp.eq.f32.partialorder %v1031, 8.507059e+37
        %v1033 = vand.u32 %v1021, 2147483648
        %v1034 = vor.u32 1.1754944e-38, %v1033
        %v1035 = vsel %vm1032, %v1034, %v1030
        %v1036 = vmul.f32 1.0, %v1035
        %v1037 = vmul.f32 %v1018, %v1036
        %v1038 = vpack.c.bf16 %v1037, %v1037
        %s1039 = scalar_lea.vmem %s671, 8 [#allocation17]
        %1040 = vst.msk [vmem:[%s1039] sm:$0xf] %vm869, %v1038
        %v1042 = vunpack.c.l.b16 %v985
        %v1043 = vpack.c.b16 %v1042, %v1042
        %1044 = vrot.lane.b32.xlu0 %v1043, 112
        %v1045 = vpop.permute.xlu0 %1044
        %v1047 = vsel %vm819, %v1038, 0
        %v1050 = vsel %vm874, %v1045, 0
        %1052 = vmatpush.bf16.msra.mxu0 0
        %1053 = vmatpush.bf16.msra.mxu0 0
        %1054 = vmatpush.bf16.msra.mxu0 0
        %1055 = vmatpush.bf16.msra.mxu0 0
        %1056 = vmatpush.bf16.msra.mxu0 0
        %1057 = vmatpush.bf16.msra.mxu0 0
        %1058 = vmatpush.bf16.msra.mxu0 0
        %1059 = vmatpush.bf16.msra.mxu0 %v1050
        %1060 = vmatmul.bf16.gmra.mxu0 %v1047
        %v1061 = vpop.f32.mrf.mxu0
        %v1062 = vadd.f32 0.0, %v1061
        %v1063 = vpop.f32.mrf.mxu0
        %1064 = vdwg.mxu0
        %v1065 = vpack.c.bf16 %v1062, %v1062
        %1067 = vrot.lane.b32.xlu0 %v1065, 16
        %v1068 = vpop.permute.xlu0 %1067
        %vm1070 = vcmask 191616
        %1071 = vst.msk [vmem:[#allocation4] sm:$0xf] %vm1070, %v1068
        %v1072 = vld [vmem:[#allocation2] sm:$0xf]
        %v1073 = vld [vmem:[#allocation3] sm:$0xf]
        %1074 = vrot.lane.b32.xlu0 %v897, 104
        %v1075 = vpop.permute.xlu0 %1074
        %v1077 = vunpack.c.l.b16 %v1072
        %v1078 = vpack.c.b16 %v1077, %v1077
        %1079 = vrot.lane.b32.xlu0 %v1078, 104
        %v1080 = vpop.permute.xlu0 %1079
        %v1082 = vsel %vm819, %v1075, 0
        %v1085 = vsel %vm819, %v1080, 0
        %1087 = vmatpush.bf16.xpose.msra.mxu0 0
        %1088 = vmatpush.bf16.xpose.msra.mxu0 0
        %1089 = vmatpush.bf16.xpose.msra.mxu0 0
        %1090 = vmatpush.bf16.xpose.msra.mxu0 0
        %1091 = vmatpush.bf16.xpose.msra.mxu0 0
        %1092 = vmatpush.bf16.xpose.msra.mxu0 0
        %1093 = vmatpush.bf16.xpose.msra.mxu0 0
        %1094 = vmatpush.bf16.xpose.msra.mxu0 %v1085
        %1095 = vmatmul.bf16.gmra.mxu0 %v1082
        %v1096 = vpop.f32.mrf.mxu0
        %v1097 = vadd.f32 0.0, %v1096
        %v1098 = vpop.f32.mrf.mxu0
        %1099 = vdwg.mxu0
        %v1100 = vsel %vm841, -inf, %v1097
        %v1101 = vsel %vm819, %v1100, -inf
        %1102 = vmax.xlane.f32.xlu0 %v1101
        %v1103 = vpop.xlane.xlu0 %1102
        %v1104 = vsub.f32 %v1100, %v1103
        %v1105 = vmul.f32 %v1104, 1.442695
        %v1106 = vpow.pop %v1105
        %v1107 = vsel %vm819, %v1106, 0.0
        %1108 = vadd.xlane.f32.xlu0 %v1107
        %v1109 = vpop.xlane.xlu0 %1108
        %v1110 = vrcp.pop %v1109
        %v1111 = vmul.f32 %v1109, %v1110
        %v1112 = vsub.f32 1.0, %v1111
        %v1113 = vmul.f32 %v1110, %v1112
        %v1114 = vadd.f32 %v1110, %v1113
        %vm1115 = vweird.f32 %v1109
        %vm1116 = vweird.f32 %v1110
        %vm1117 = vmor %vm1115, %vm1116
        %v1118 = vsel %vm1117, %v1110, %v1114
        %v1119 = vand.u32 2147483647, %v1109
        %vm1120 = vcmp.eq.f32.partialorder %v1119, 8.507059e+37
        %v1121 = vand.u32 %v1109, 2147483648
        %v1122 = vor.u32 1.1754944e-38, %v1121
        %v1123 = vsel %vm1120, %v1122, %v1118
        %v1124 = vmul.f32 1.0, %v1123
        %v1125 = vmul.f32 %v1106, %v1124
        %v1126 = vpack.c.bf16 %v1125, %v1125
        %s1127 = scalar_lea.vmem %s671, 12 [#allocation17]
        %1128 = vst.msk [vmem:[%s1127] sm:$0xf] %vm869, %v1126
        %v1130 = vunpack.c.l.b16 %v1073
        %v1131 = vpack.c.b16 %v1130, %v1130
        %1132 = vrot.lane.b32.xlu0 %v1131, 104
        %v1133 = vpop.permute.xlu0 %1132
        %v1135 = vsel %vm819, %v1126, 0
        %v1138 = vsel %vm874, %v1133, 0
        %1140 = vmatpush.bf16.msra.mxu0 0
        %1141 = vmatpush.bf16.msra.mxu0 0
        %1142 = vmatpush.bf16.msra.mxu0 0
        %1143 = vmatpush.bf16.msra.mxu0 0
        %1144 = vmatpush.bf16.msra.mxu0 0
        %1145 = vmatpush.bf16.msra.mxu0 0
        %1146 = vmatpush.bf16.msra.mxu0 0
        %1147 = vmatpush.bf16.msra.mxu0 %v1138
        %1148 = vmatmul.bf16.gmra.mxu0 %v1135
        %v1149 = vpop.f32.mrf.mxu0
        %v1150 = vadd.f32 0.0, %v1149
        %v1151 = vpop.f32.mrf.mxu0
        %1152 = vdwg.mxu0
        %v1153 = vpack.c.bf16 %v1150, %v1150
        %1155 = vrot.lane.b32.xlu0 %v1153, 24
        %v1156 = vpop.permute.xlu0 %1155
        %vm1158 = vcmask 257216
        %1159 = vst.msk [vmem:[#allocation4] sm:$0xf] %vm1158, %v1156
        %v1160 = vld [vmem:[#allocation4] sm:$0xf]
        %v1161 = vld [vmem:[#allocation14] sm:$0xf]
        %v1162 = vld [vmem:[#allocation14 + $0x4] sm:$0xf]
        %v1163 = vld [vmem:[#allocation14 + $0x8] sm:$0xf]
        %v1164 = vld [vmem:[#allocation14 + $0xc] sm:$0xf]
        %v1165 = vld [vmem:[%s12] sm:$0x1]
        %v1167 = vperm.slane %v1165, 0
        %v1173 = vunpack.c.l.b16 %v1161
        %v1174 = vunpack.c.l.b16 %v1162
        %v1175 = vunpack.c.l.b16 %v1163
        %v1176 = vunpack.c.l.b16 %v1164
        %v1177 = vpack.c.b16 %v1174, %v1173
        %v1178 = vpack.c.b16 %v1176, %v1175
        %v1182 = vsel %vm792, %v1160, 0
        %1184 = vmatpush.bf16.msra.mxu0 0
        %1185 = vmatpush.bf16.msra.mxu0 0
        %1186 = vmatpush.bf16.msra.mxu0 0
        %1187 = vmatpush.bf16.msra.mxu0 0
        %1188 = vmatpush.bf16.msra.mxu0 0
        %1189 = vmatpush.bf16.msra.mxu0 0
        %1190 = vmatpush.bf16.msra.mxu0 %v1178
        %1191 = vmatpush.bf16.msra.mxu0 %v1177
        %1192 = vmatmul.bf16.gmra.mxu0 %v1182
        %v1193 = vpop.f32.mrf.mxu0
        %v1194 = vadd.f32 %v1167, %v1193
        %v1195 = vpop.f32.mrf.mxu0
        %1196 = vdwg.mxu0
        %v1197 = vmul.f32 %v1194, %v812
        %1198 = vst.msk [vmem:[%s664] sm:$0xff] %vm792, %v1197
        %s1199 = sand.u32 %s364, 1
        %s1200 = scalar_lea.sflag [#allocation7], %s1199
        %s1201 = sand.u32 %s364, 1
        %s1202 = smul.addr %s1201, 8
        %s1203 = scalar_lea.vmem [#allocation16], %s1202
        %s1204 = sand.u32 %s392, 1
        %s1205 = scalar_lea.sflag [#allocation18], %s1204
        %s1206 = sand.u32 %s392, 1
        %s1207 = smul.addr %s1206, 16
        %s1208 = scalar_lea.vmem [#allocation17], %s1207
        // Predicated region
        $region101: #{tpu_custom_call.1} parent=71 // pred_check
          %p1209 = pneg %p374
        $region102: #{tpu_custom_call.1} parent=71 // pred_check_branch
          %1211 = sbr.rel (%p1209) target = $region104
        $region103: #{tpu_custom_call.1} parent=71 // pred_region
          %1213 = vsyncadd %s1200, 0
          %s1214 = sadd.s32 %s45, %s44
          %s1215 = smul.addr %s1214, 8
          %s1216 = scalar_lea.hbm %s13, %s1215
          %s1218 = sshll.u32 %s1203, 4
          %s1219 = int_to_ptr.vmem [resolvable:$true] %s1218
          %s1220 = sshll.u32 %s1216, 4
          %s1221 = int_to_ptr.hbm [resolvable:$true] %s1220
          %1223 = dma.vmem_to_hbm [thread:$0]  %s1219, 128, %s1221, %s1200
        $region104: #{tpu_custom_call.1} parent=71 // pred_fallthru
          _
        // Predicated region
        $region105: #{tpu_custom_call.1} parent=71 // pred_check
          %p1224 = pneg %p402
        $region106: #{tpu_custom_call.1} parent=71 // pred_check_branch
          %1226 = sbr.rel (%p1224) target = $region108
        $region107: #{tpu_custom_call.1} parent=71 // pred_region
          %1228 = vsyncadd %s1205, 0
          %s1229 = smul.addr %s44, 4
          %s1230 = sadd.s32 %s45, %s1229
          %s1231 = smul.addr %s1230, 4
          %s1232 = scalar_lea.hbm %s14, %s1231
          %s1233 = sshll.u32 %s1208, 4
          %s1234 = int_to_ptr.vmem [resolvable:$true] %s1233
          %s1235 = sshll.u32 %s1232, 4
          %s1236 = int_to_ptr.hbm [resolvable:$true] %s1235
          %1241 = dma.vmem_to_hbm [thread:$0]  %s1234, 256, %s1236, %s1205, 64, 64, 4
        $region108: #{tpu_custom_call.1} parent=71 // pred_fallthru
          _
      $region72: #{tpu_custom_call.1} parent=5 // pred_fallthru
        _
      %p1242 = scmp.le.s32.totalorder 2, %s35
      // Predicated region
      $region109: #{tpu_custom_call.1} parent=5 // pred_check
        %p1243 = pneg %p1242
      $region110: #{tpu_custom_call.1} parent=5 // pred_check_branch
        %1245 = sbr.rel (%p1243) target = $region112
      $region111: #{tpu_custom_call.1} parent=5 // pred_region
        %s1246 = ssub.s32 %s35, 2
        // Predicated region
        $region113: #{tpu_custom_call.1} parent=111 // pred_check
          %p1247 = pneg %p380
        $region114: #{tpu_custom_call.1} parent=111 // pred_check_branch
          %1249 = sbr.rel (%p1247) target = $region116
        $region115: #{tpu_custom_call.1} parent=111 // pred_region
          %s1250 = sand.u32 %s365, 1
          %s1251 = scalar_lea.sflag [#allocation7], %s1250
          %s1252 = sand.u32 %s365, 1
          %s1253 = smul.addr %s1252, 8
          %s1254 = scalar_lea.vmem [#allocation16], %s1253
          %1256 = dma.done %s1251, 128
        $region116: #{tpu_custom_call.1} parent=111 // pred_fallthru
          _
        // Predicated region
        $region117: #{tpu_custom_call.1} parent=111 // pred_check
          %p1257 = pneg %p408
        $region118: #{tpu_custom_call.1} parent=111 // pred_check_branch
          %1259 = sbr.rel (%p1257) target = $region120
        $region119: #{tpu_custom_call.1} parent=111 // pred_region
          %s1260 = sand.u32 %s393, 1
          %s1261 = scalar_lea.sflag [#allocation18], %s1260
          %s1262 = sand.u32 %s393, 1
          %s1263 = smul.addr %s1262, 16
          %s1264 = scalar_lea.vmem [#allocation17], %s1263
          %1266 = dma.done %s1261, 256
        $region120: #{tpu_custom_call.1} parent=111 // pred_fallthru
          _
      $region112: #{tpu_custom_call.1} parent=5 // pred_fallthru
        _
    $region6: #{tpu_custom_call.1} parent=1 // loop_footer
      %s39 = sadd.s32 1, %s35
    $region7: #{tpu_custom_call.1} parent=1 // loop_footer_branch
      %34 = sbr.rel target = $region3
    $region8: #{tpu_custom_call.1} parent=1 // loop_exit
      _
    %1267 = vsyncpa [#allocation6], 1
    %s1268 = scalar_lea.sflag [#allocation6], 1
    %1269 = vsyncpa %s1268, 1
    %1270 = vsyncpa [#allocation9], 1
    %s1271 = scalar_lea.sflag [#allocation9], 1
    %1272 = vsyncpa %s1271, 1
    %1273 = vsyncpa [#allocation12], 1
    %1274 = vsyncpa [#allocation15], 1
    %1275 = vsyncpa [#allocation7], 1
    %s1276 = scalar_lea.sflag [#allocation7], 1
    %1277 = vsyncpa %s1276, 1
    %1278 = vsyncpa [#allocation18], 1
    %s1279 = scalar_lea.sflag [#allocation18], 1
    %1280 = vsyncpa %s1279, 1

</llo_original>
